<compile_context>
chip_gen: v5e
topology: v5e:2x2
jax: 0.10.0
libtpu: 0.0.40
codegen_flags: <defaults>
</compile_context>

<pallas_src>
import functools
import math

import jax
import jax.numpy as jnp
from jax.experimental import pallas as pl
from jax.experimental.pallas import tpu as pltpu


def _mhsa_kernel(x_ref, wqkv_ref, bqkv_ref, wout_ref, bout_ref, out_ref,
                 q_sc, k_sc, v_sc, slab_sc,
                 *, num_heads, head_dim, seq_len, batch_block):
    H, D, S, BB = num_heads, head_dim, seq_len, batch_block
    E = H * D

    # 1) Fused QKV projection: one MXU pass, bf16 operands, f32 accumulation.
    #    Softmax scale is already folded into the Q rows of wqkv/bqkv.
    xb = x_ref[...].astype(jnp.bfloat16)                            # (BB*S, E)
    qkv = jnp.dot(xb, wqkv_ref[...],
                  preferred_element_type=jnp.float32) + bqkv_ref[...]  # (BB*S, 3E)

    # 2) Head split -> (BB*H, S, D) scratch (static slices, store-only; this is
    #    the reshape/permute of the PyTorch forward done as lane placement).
    for b in range(BB):
        r0 = b * S
        for h in range(H):
            c0 = h * D
            bh = b * H + h
            q_sc[bh] = qkv[r0:r0 + S, c0:c0 + D]
            k_sc[bh] = qkv[r0:r0 + S, E + c0:E + c0 + D]
            v_sc[bh] = qkv[r0:r0 + S, 2 * E + c0:2 * E + c0 + D]

    q = q_sc[...].astype(jnp.bfloat16)                              # (BB*H, S, D)
    k = k_sc[...].astype(jnp.bfloat16)
    v = v_sc[...].astype(jnp.bfloat16)

    # 3) Attention batched over all (batch, head) pairs in one MXU stream.
    s = jnp.einsum("bqd,bkd->bqk", q, k,
                   preferred_element_type=jnp.float32)              # (BB*H, S, S)
    s = s - jnp.max(s, axis=-1, keepdims=True)
    p = jnp.exp(s)
    denom = jnp.sum(p, axis=-1, keepdims=True)
    p = p * pl.reciprocal(denom, approx=True)                       # divide -> EUP
    # attention dropout: eval-mode identity (no-op)
    ctx = jnp.einsum("bqk,bkd->bqd", p.astype(jnp.bfloat16), v,
                     preferred_element_type=jnp.float32)            # (BB*H, S, D)

    # 4) Re-pack heads into a (BB*S, E) slab (cheap lane placement) ...
    for b in range(BB):
        r0 = b * S
        for h in range(H):
            slab_sc[r0:r0 + S, h * D:(h + 1) * D] = ctx[b * H + h]

    # 5) ... so the output projection is ONE (BB*S, E) @ (E, E) matmul (K = E).
    out = jnp.dot(slab_sc[...].astype(jnp.bfloat16), wout_ref[...],
                  preferred_element_type=jnp.float32) + bout_ref[...]
    out_ref[...] = out.astype(out_ref.dtype)


def make_params(key, embed_dim):
    """PyTorch-style nn.Linear init (uniform +/- 1/sqrt(fan_in))."""
    E = embed_dim
    k1, k2, k3, k4 = jax.random.split(key, 4)
    s = 1.0 / math.sqrt(E)

    def u(k, shape):
        return jax.random.uniform(k, shape, jnp.float32, -s, s)

    return {
        "w_qkv": u(k1, (3 * E, E)),   # PyTorch nn.Linear layout (out, in)
        "b_qkv": u(k2, (3 * E,)),
        "w_out": u(k3, (E, E)),
        "b_out": u(k4, (E,)),
    }


def multi_head_self_attention(x, params, *, num_heads, batch_block=1):
    B, S, E = x.shape
    assert E % num_heads == 0, "embed_dim must be divisible by num_heads"
    assert B % batch_block == 0, "batch must be divisible by batch_block"
    D = E // num_heads
    scale = D ** -0.5
    BB = batch_block

    # Host-side weight prep:
    #  * transpose to (K, N)-major so every in-kernel contraction is standard,
    #  * fold the softmax scale into the Q rows of the QKV projection,
    #  * cast matmul operands to bf16 (f32 accumulation in-kernel), biases f32.
    row_scale = jnp.concatenate(
        [jnp.full((E,), scale, jnp.float32), jnp.ones((2 * E,), jnp.float32)])
    wqkv_t = (params["w_qkv"] * row_scale[:, None]).T.astype(jnp.bfloat16)   # (E, 3E)
    bqkv = (params["b_qkv"] * row_scale).reshape(1, 3 * E).astype(jnp.float32)
    wout_t = params["w_out"].T.astype(jnp.bfloat16)                          # (E, E)
    bout = params["b_out"].reshape(1, E).astype(jnp.float32)

    # Flatten (B,S,E) -> (B*S,E): free row-major view; one program then carries
    # `batch_block` batch elements (larger M per MXU pass, fewer grid steps).
    # x is passed in its native dtype (no wrapper cast / extra HBM round trip);
    # the bf16 cast happens in-kernel.
    x2d = x.reshape(B * S, E)

    kernel = functools.partial(_mhsa_kernel, num_heads=num_heads, head_dim=D,
                               seq_len=S, batch_block=BB)

    out2d = pl.pallas_call(
        kernel,
        out_shape=jax.ShapeDtypeStruct((B * S, E), jnp.float32),
        grid_spec=pltpu.PrefetchScalarGridSpec(
            num_scalar_prefetch=0,
            grid=(B // BB,),
            in_specs=[
                pl.BlockSpec((BB * S, E), lambda i: (i, 0)),        # x rows
                pl.BlockSpec((E, 3 * E), lambda i: (0, 0)),         # W_qkv^T (bf16)
                pl.BlockSpec((1, 3 * E), lambda i: (0, 0)),         # b_qkv
                pl.BlockSpec((E, E), lambda i: (0, 0)),             # W_out^T (bf16)
                pl.BlockSpec((1, E), lambda i: (0, 0)),             # b_out
            ],
            # Note: with E=64 the out block's lane dim is < 128 (masked stores);
            # at realistic E (>=128) this out_spec is lane-dense as-is.
            out_specs=pl.BlockSpec((BB * S, E), lambda i: (i, 0)),
            scratch_shapes=[
                pltpu.VMEM((BB * num_heads, S, D), jnp.float32),    # Q heads
                pltpu.VMEM((BB * num_heads, S, D), jnp.float32),    # K heads
                pltpu.VMEM((BB * num_heads, S, D), jnp.float32),    # V heads
                pltpu.VMEM((BB * S, E), jnp.float32),               # attn-out slab
            ],
        ),
        compiler_params=pltpu.CompilerParams(
            dimension_semantics=("parallel",),
            vmem_limit_bytes=32 * 1024 * 1024,
        ),
    )(x2d, wqkv_t, bqkv, wout_t, bout)

    return out2d.reshape(B, S, E)


def mhsa_reference(x, params, num_heads):
    """Pure-JAX f32 reference mirroring the PyTorch forward (dropout in eval)."""
    B, S, E = x.shape
    D = E // num_heads
    qkv = x @ params["w_qkv"].T + params["b_qkv"]            # (B,S,3E)
    qkv = qkv.reshape(B, S, 3, num_heads, D).transpose(2, 0, 3, 1, 4)
    q, k, v = qkv[0], qkv[1], qkv[2]                         # (B,H,S,D)
    s = jnp.einsum("bhqd,bhkd->bhqk", q, k) * (D ** -0.5)
    p = jax.nn.softmax(s, axis=-1)
    o = jnp.einsum("bhqk,bhkd->bhqd", p, v)
    o = o.transpose(0, 2, 1, 3).reshape(B, S, E)
    return o @ params["w_out"].T + params["b_out"]


if __name__ == "__main__":
    key = jax.random.PRNGKey(0)
    kx, kp = jax.random.split(key)

    B, S, E, NUM_HEADS = 4, 8, 64, 8                         # head_dim = 8
    BATCH_BLOCK = 2                                          # -> grid = (2,)

    x = jax.random.normal(kx, (B, S, E), jnp.float32)
    params = make_params(kp, E)

    mhsa = jax.jit(functools.partial(multi_head_self_attention,
                                     num_heads=NUM_HEADS,
                                     batch_block=BATCH_BLOCK))
    out = jax.block_until_ready(mhsa(x, params))

    ref = mhsa_reference(x, params, NUM_HEADS)

    assert out.shape == (B, S, E), out.shape
    assert bool(jnp.all(jnp.isfinite(out)))
    # bf16 MXU operands + approx reciprocal vs an all-f32 reference.
    assert bool(jnp.allclose(out, ref, atol=2e-2, rtol=2e-2)), \
        float(jnp.max(jnp.abs(out - ref)))
    print("KERNEL_OK")
</pallas_src>

<mosaic_0001>
module attributes {stable_mosaic.version = 11 : i64} {
  func.func @_mhsa_kernel(%arg0: i32, %arg1: memref<16x64xf32, #tpu.memory_space<vmem>>, %arg2: memref<64x192xbf16, #tpu.memory_space<vmem>>, %arg3: memref<1x192xf32, #tpu.memory_space<vmem>>, %arg4: memref<64x64xbf16, #tpu.memory_space<vmem>>, %arg5: memref<1x64xf32, #tpu.memory_space<vmem>>, %arg6: memref<16x64xf32, #tpu.memory_space<vmem>>, %arg7: memref<16x8x8xf32, #tpu.memory_space<vmem>>, %arg8: memref<16x8x8xf32, #tpu.memory_space<vmem>>, %arg9: memref<16x8x8xf32, #tpu.memory_space<vmem>>, %arg10: memref<16x64xf32, #tpu.memory_space<vmem>>) attributes {dimension_semantics = [#tpu.dimension_semantics<parallel>], iteration_bounds = array<i64: 2>, scalar_prefetch = 0 : i64, scratch_operands = 4 : i64, tpu.core_type = #tpu.core_type<tc>, window_params = [{transform_indices = @transform_0, window_bounds = array<i64: 16, 64>}, {pipeline_mode = #tpu.pipeline_mode<synchronous>, transform_indices = @transform_1, window_bounds = array<i64: 64, 192>}, {pipeline_mode = #tpu.pipeline_mode<synchronous>, transform_indices = @transform_2, window_bounds = array<i64: 1, 192>}, {pipeline_mode = #tpu.pipeline_mode<synchronous>, transform_indices = @transform_3, window_bounds = array<i64: 64, 64>}, {pipeline_mode = #tpu.pipeline_mode<synchronous>, transform_indices = @transform_4, window_bounds = array<i64: 1, 64>}, {transform_indices = @transform_5, window_bounds = array<i64: 16, 64>}]} {
    %c0 = arith.constant 0 : index
    %c0_0 = arith.constant 0 : index
    %0 = vector.load %arg1[%c0, %c0_0] : memref<16x64xf32, #tpu.memory_space<vmem>>, vector<16x64xf32>
    %1 = arith.truncf %0 : vector<16x64xf32> to vector<16x64xbf16>
    %c0_1 = arith.constant 0 : index
    %c0_2 = arith.constant 0 : index
    %2 = vector.load %arg2[%c0_1, %c0_2] : memref<64x192xbf16, #tpu.memory_space<vmem>>, vector<64x192xbf16>
    %cst = arith.constant dense<0.000000e+00> : vector<16x192xf32>
    %3 = tpu.matmul %1, %2, %cst {dimension_numbers = #tpu.dot_dimension_numbers<[1], [0], [0], [1], [0, 0, 1, 1], [], []>} : vector<16x64xbf16>, vector<64x192xbf16>, vector<16x192xf32> -> vector<16x192xf32>
    %c0_3 = arith.constant 0 : index
    %c0_4 = arith.constant 0 : index
    %4 = vector.load %arg3[%c0_3, %c0_4] : memref<1x192xf32, #tpu.memory_space<vmem>>, vector<1x192xf32>
    %5 = vector.broadcast %4 : vector<1x192xf32> to vector<16x192xf32>
    %6 = arith.addf %3, %5 : vector<16x192xf32>
    %7 = vector.extract_strided_slice %6 {offsets = [0, 0], sizes = [8, 8], strides = [1, 1]} : vector<16x192xf32> to vector<8x8xf32>
    %c0_5 = arith.constant 0 : index
    %c0_6 = arith.constant 0 : index
    %c0_7 = arith.constant 0 : index
    %8 = vector.load %arg7[%c0_5, %c0_6, %c0_7] : memref<16x8x8xf32, #tpu.memory_space<vmem>>, vector<1x8x8xf32>
    %9 = vector.shape_cast %8 : vector<1x8x8xf32> to vector<8x8xf32>
    %10 = vector.shape_cast %7 : vector<8x8xf32> to vector<1x8x8xf32>
    tpu.vector_store %arg7[%c0_5, %c0_6, %c0_7], %10 {strides = array<i32>} : memref<16x8x8xf32, #tpu.memory_space<vmem>>, vector<1x8x8xf32>,
    %11 = vector.extract_strided_slice %6 {offsets = [0, 64], sizes = [8, 8], strides = [1, 1]} : vector<16x192xf32> to vector<8x8xf32>
    %c0_8 = arith.constant 0 : index
    %c0_9 = arith.constant 0 : index
    %c0_10 = arith.constant 0 : index
    %12 = vector.load %arg8[%c0_8, %c0_9, %c0_10] : memref<16x8x8xf32, #tpu.memory_space<vmem>>, vector<1x8x8xf32>
    %13 = vector.shape_cast %12 : vector<1x8x8xf32> to vector<8x8xf32>
    %14 = vector.shape_cast %11 : vector<8x8xf32> to vector<1x8x8xf32>
    tpu.vector_store %arg8[%c0_8, %c0_9, %c0_10], %14 {strides = array<i32>} : memref<16x8x8xf32, #tpu.memory_space<vmem>>, vector<1x8x8xf32>,
    %15 = vector.extract_strided_slice %6 {offsets = [0, 128], sizes = [8, 8], strides = [1, 1]} : vector<16x192xf32> to vector<8x8xf32>
    %c0_11 = arith.constant 0 : index
    %c0_12 = arith.constant 0 : index
    %c0_13 = arith.constant 0 : index
    %16 = vector.load %arg9[%c0_11, %c0_12, %c0_13] : memref<16x8x8xf32, #tpu.memory_space<vmem>>, vector<1x8x8xf32>
    %17 = vector.shape_cast %16 : vector<1x8x8xf32> to vector<8x8xf32>
    %18 = vector.shape_cast %15 : vector<8x8xf32> to vector<1x8x8xf32>
    tpu.vector_store %arg9[%c0_11, %c0_12, %c0_13], %18 {strides = array<i32>} : memref<16x8x8xf32, #tpu.memory_space<vmem>>, vector<1x8x8xf32>,
    %19 = vector.extract_strided_slice %6 {offsets = [0, 8], sizes = [8, 8], strides = [1, 1]} : vector<16x192xf32> to vector<8x8xf32>
    %c1 = arith.constant 1 : index
    %c0_14 = arith.constant 0 : index
    %c0_15 = arith.constant 0 : index
    %20 = vector.load %arg7[%c1, %c0_14, %c0_15] : memref<16x8x8xf32, #tpu.memory_space<vmem>>, vector<1x8x8xf32>
    %21 = vector.shape_cast %20 : vector<1x8x8xf32> to vector<8x8xf32>
    %22 = vector.shape_cast %19 : vector<8x8xf32> to vector<1x8x8xf32>
    tpu.vector_store %arg7[%c1, %c0_14, %c0_15], %22 {strides = array<i32>} : memref<16x8x8xf32, #tpu.memory_space<vmem>>, vector<1x8x8xf32>,
    %23 = vector.extract_strided_slice %6 {offsets = [0, 72], sizes = [8, 8], strides = [1, 1]} : vector<16x192xf32> to vector<8x8xf32>
    %c1_16 = arith.constant 1 : index
    %c0_17 = arith.constant 0 : index
    %c0_18 = arith.constant 0 : index
    %24 = vector.load %arg8[%c1_16, %c0_17, %c0_18] : memref<16x8x8xf32, #tpu.memory_space<vmem>>, vector<1x8x8xf32>
    %25 = vector.shape_cast %24 : vector<1x8x8xf32> to vector<8x8xf32>
    %26 = vector.shape_cast %23 : vector<8x8xf32> to vector<1x8x8xf32>
    tpu.vector_store %arg8[%c1_16, %c0_17, %c0_18], %26 {strides = array<i32>} : memref<16x8x8xf32, #tpu.memory_space<vmem>>, vector<1x8x8xf32>,
    %27 = vector.extract_strided_slice %6 {offsets = [0, 136], sizes = [8, 8], strides = [1, 1]} : vector<16x192xf32> to vector<8x8xf32>
    %c1_19 = arith.constant 1 : index
    %c0_20 = arith.constant 0 : index
    %c0_21 = arith.constant 0 : index
    %28 = vector.load %arg9[%c1_19, %c0_20, %c0_21] : memref<16x8x8xf32, #tpu.memory_space<vmem>>, vector<1x8x8xf32>
    %29 = vector.shape_cast %28 : vector<1x8x8xf32> to vector<8x8xf32>
    %30 = vector.shape_cast %27 : vector<8x8xf32> to vector<1x8x8xf32>
    tpu.vector_store %arg9[%c1_19, %c0_20, %c0_21], %30 {strides = array<i32>} : memref<16x8x8xf32, #tpu.memory_space<vmem>>, vector<1x8x8xf32>,
    %31 = vector.extract_strided_slice %6 {offsets = [0, 16], sizes = [8, 8], strides = [1, 1]} : vector<16x192xf32> to vector<8x8xf32>
    %c2 = arith.constant 2 : index
    %c0_22 = arith.constant 0 : index
    %c0_23 = arith.constant 0 : index
    %32 = vector.load %arg7[%c2, %c0_22, %c0_23] : memref<16x8x8xf32, #tpu.memory_space<vmem>>, vector<1x8x8xf32>
    %33 = vector.shape_cast %32 : vector<1x8x8xf32> to vector<8x8xf32>
    %34 = vector.shape_cast %31 : vector<8x8xf32> to vector<1x8x8xf32>
    tpu.vector_store %arg7[%c2, %c0_22, %c0_23], %34 {strides = array<i32>} : memref<16x8x8xf32, #tpu.memory_space<vmem>>, vector<1x8x8xf32>,
    %35 = vector.extract_strided_slice %6 {offsets = [0, 80], sizes = [8, 8], strides = [1, 1]} : vector<16x192xf32> to vector<8x8xf32>
    %c2_24 = arith.constant 2 : index
    %c0_25 = arith.constant 0 : index
    %c0_26 = arith.constant 0 : index
    %36 = vector.load %arg8[%c2_24, %c0_25, %c0_26] : memref<16x8x8xf32, #tpu.memory_space<vmem>>, vector<1x8x8xf32>
    %37 = vector.shape_cast %36 : vector<1x8x8xf32> to vector<8x8xf32>
    %38 = vector.shape_cast %35 : vector<8x8xf32> to vector<1x8x8xf32>
    tpu.vector_store %arg8[%c2_24, %c0_25, %c0_26], %38 {strides = array<i32>} : memref<16x8x8xf32, #tpu.memory_space<vmem>>, vector<1x8x8xf32>,
    %39 = vector.extract_strided_slice %6 {offsets = [0, 144], sizes = [8, 8], strides = [1, 1]} : vector<16x192xf32> to vector<8x8xf32>
    %c2_27 = arith.constant 2 : index
    %c0_28 = arith.constant 0 : index
    %c0_29 = arith.constant 0 : index
    %40 = vector.load %arg9[%c2_27, %c0_28, %c0_29] : memref<16x8x8xf32, #tpu.memory_space<vmem>>, vector<1x8x8xf32>
    %41 = vector.shape_cast %40 : vector<1x8x8xf32> to vector<8x8xf32>
    %42 = vector.shape_cast %39 : vector<8x8xf32> to vector<1x8x8xf32>
    tpu.vector_store %arg9[%c2_27, %c0_28, %c0_29], %42 {strides = array<i32>} : memref<16x8x8xf32, #tpu.memory_space<vmem>>, vector<1x8x8xf32>,
    %43 = vector.extract_strided_slice %6 {offsets = [0, 24], sizes = [8, 8], strides = [1, 1]} : vector<16x192xf32> to vector<8x8xf32>
    %c3 = arith.constant 3 : index
    %c0_30 = arith.constant 0 : index
    %c0_31 = arith.constant 0 : index
    %44 = vector.load %arg7[%c3, %c0_30, %c0_31] : memref<16x8x8xf32, #tpu.memory_space<vmem>>, vector<1x8x8xf32>
    %45 = vector.shape_cast %44 : vector<1x8x8xf32> to vector<8x8xf32>
    %46 = vector.shape_cast %43 : vector<8x8xf32> to vector<1x8x8xf32>
    tpu.vector_store %arg7[%c3, %c0_30, %c0_31], %46 {strides = array<i32>} : memref<16x8x8xf32, #tpu.memory_space<vmem>>, vector<1x8x8xf32>,
    %47 = vector.extract_strided_slice %6 {offsets = [0, 88], sizes = [8, 8], strides = [1, 1]} : vector<16x192xf32> to vector<8x8xf32>
    %c3_32 = arith.constant 3 : index
    %c0_33 = arith.constant 0 : index
    %c0_34 = arith.constant 0 : index
    %48 = vector.load %arg8[%c3_32, %c0_33, %c0_34] : memref<16x8x8xf32, #tpu.memory_space<vmem>>, vector<1x8x8xf32>
    %49 = vector.shape_cast %48 : vector<1x8x8xf32> to vector<8x8xf32>
    %50 = vector.shape_cast %47 : vector<8x8xf32> to vector<1x8x8xf32>
    tpu.vector_store %arg8[%c3_32, %c0_33, %c0_34], %50 {strides = array<i32>} : memref<16x8x8xf32, #tpu.memory_space<vmem>>, vector<1x8x8xf32>,
    %51 = vector.extract_strided_slice %6 {offsets = [0, 152], sizes = [8, 8], strides = [1, 1]} : vector<16x192xf32> to vector<8x8xf32>
    %c3_35 = arith.constant 3 : index
    %c0_36 = arith.constant 0 : index
    %c0_37 = arith.constant 0 : index
    %52 = vector.load %arg9[%c3_35, %c0_36, %c0_37] : memref<16x8x8xf32, #tpu.memory_space<vmem>>, vector<1x8x8xf32>
    %53 = vector.shape_cast %52 : vector<1x8x8xf32> to vector<8x8xf32>
    %54 = vector.shape_cast %51 : vector<8x8xf32> to vector<1x8x8xf32>
    tpu.vector_store %arg9[%c3_35, %c0_36, %c0_37], %54 {strides = array<i32>} : memref<16x8x8xf32, #tpu.memory_space<vmem>>, vector<1x8x8xf32>,
    %55 = vector.extract_strided_slice %6 {offsets = [0, 32], sizes = [8, 8], strides = [1, 1]} : vector<16x192xf32> to vector<8x8xf32>
    %c4 = arith.constant 4 : index
    %c0_38 = arith.constant 0 : index
    %c0_39 = arith.constant 0 : index
    %56 = vector.load %arg7[%c4, %c0_38, %c0_39] : memref<16x8x8xf32, #tpu.memory_space<vmem>>, vector<1x8x8xf32>
    %57 = vector.shape_cast %56 : vector<1x8x8xf32> to vector<8x8xf32>
    %58 = vector.shape_cast %55 : vector<8x8xf32> to vector<1x8x8xf32>
    tpu.vector_store %arg7[%c4, %c0_38, %c0_39], %58 {strides = array<i32>} : memref<16x8x8xf32, #tpu.memory_space<vmem>>, vector<1x8x8xf32>,
    %59 = vector.extract_strided_slice %6 {offsets = [0, 96], sizes = [8, 8], strides = [1, 1]} : vector<16x192xf32> to vector<8x8xf32>
    %c4_40 = arith.constant 4 : index
    %c0_41 = arith.constant 0 : index
    %c0_42 = arith.constant 0 : index
    %60 = vector.load %arg8[%c4_40, %c0_41, %c0_42] : memref<16x8x8xf32, #tpu.memory_space<vmem>>, vector<1x8x8xf32>
    %61 = vector.shape_cast %60 : vector<1x8x8xf32> to vector<8x8xf32>
    %62 = vector.shape_cast %59 : vector<8x8xf32> to vector<1x8x8xf32>
    tpu.vector_store %arg8[%c4_40, %c0_41, %c0_42], %62 {strides = array<i32>} : memref<16x8x8xf32, #tpu.memory_space<vmem>>, vector<1x8x8xf32>,
    %63 = vector.extract_strided_slice %6 {offsets = [0, 160], sizes = [8, 8], strides = [1, 1]} : vector<16x192xf32> to vector<8x8xf32>
    %c4_43 = arith.constant 4 : index
    %c0_44 = arith.constant 0 : index
    %c0_45 = arith.constant 0 : index
    %64 = vector.load %arg9[%c4_43, %c0_44, %c0_45] : memref<16x8x8xf32, #tpu.memory_space<vmem>>, vector<1x8x8xf32>
    %65 = vector.shape_cast %64 : vector<1x8x8xf32> to vector<8x8xf32>
    %66 = vector.shape_cast %63 : vector<8x8xf32> to vector<1x8x8xf32>
    tpu.vector_store %arg9[%c4_43, %c0_44, %c0_45], %66 {strides = array<i32>} : memref<16x8x8xf32, #tpu.memory_space<vmem>>, vector<1x8x8xf32>,
    %67 = vector.extract_strided_slice %6 {offsets = [0, 40], sizes = [8, 8], strides = [1, 1]} : vector<16x192xf32> to vector<8x8xf32>
    %c5 = arith.constant 5 : index
    %c0_46 = arith.constant 0 : index
    %c0_47 = arith.constant 0 : index
    %68 = vector.load %arg7[%c5, %c0_46, %c0_47] : memref<16x8x8xf32, #tpu.memory_space<vmem>>, vector<1x8x8xf32>
    %69 = vector.shape_cast %68 : vector<1x8x8xf32> to vector<8x8xf32>
    %70 = vector.shape_cast %67 : vector<8x8xf32> to vector<1x8x8xf32>
    tpu.vector_store %arg7[%c5, %c0_46, %c0_47], %70 {strides = array<i32>} : memref<16x8x8xf32, #tpu.memory_space<vmem>>, vector<1x8x8xf32>,
    %71 = vector.extract_strided_slice %6 {offsets = [0, 104], sizes = [8, 8], strides = [1, 1]} : vector<16x192xf32> to vector<8x8xf32>
    %c5_48 = arith.constant 5 : index
    %c0_49 = arith.constant 0 : index
    %c0_50 = arith.constant 0 : index
    %72 = vector.load %arg8[%c5_48, %c0_49, %c0_50] : memref<16x8x8xf32, #tpu.memory_space<vmem>>, vector<1x8x8xf32>
    %73 = vector.shape_cast %72 : vector<1x8x8xf32> to vector<8x8xf32>
    %74 = vector.shape_cast %71 : vector<8x8xf32> to vector<1x8x8xf32>
    tpu.vector_store %arg8[%c5_48, %c0_49, %c0_50], %74 {strides = array<i32>} : memref<16x8x8xf32, #tpu.memory_space<vmem>>, vector<1x8x8xf32>,
    %75 = vector.extract_strided_slice %6 {offsets = [0, 168], sizes = [8, 8], strides = [1, 1]} : vector<16x192xf32> to vector<8x8xf32>
    %c5_51 = arith.constant 5 : index
    %c0_52 = arith.constant 0 : index
    %c0_53 = arith.constant 0 : index
    %76 = vector.load %arg9[%c5_51, %c0_52, %c0_53] : memref<16x8x8xf32, #tpu.memory_space<vmem>>, vector<1x8x8xf32>
    %77 = vector.shape_cast %76 : vector<1x8x8xf32> to vector<8x8xf32>
    %78 = vector.shape_cast %75 : vector<8x8xf32> to vector<1x8x8xf32>
    tpu.vector_store %arg9[%c5_51, %c0_52, %c0_53], %78 {strides = array<i32>} : memref<16x8x8xf32, #tpu.memory_space<vmem>>, vector<1x8x8xf32>,
    %79 = vector.extract_strided_slice %6 {offsets = [0, 48], sizes = [8, 8], strides = [1, 1]} : vector<16x192xf32> to vector<8x8xf32>
    %c6 = arith.constant 6 : index
    %c0_54 = arith.constant 0 : index
    %c0_55 = arith.constant 0 : index
    %80 = vector.load %arg7[%c6, %c0_54, %c0_55] : memref<16x8x8xf32, #tpu.memory_space<vmem>>, vector<1x8x8xf32>
    %81 = vector.shape_cast %80 : vector<1x8x8xf32> to vector<8x8xf32>
    %82 = vector.shape_cast %79 : vector<8x8xf32> to vector<1x8x8xf32>
    tpu.vector_store %arg7[%c6, %c0_54, %c0_55], %82 {strides = array<i32>} : memref<16x8x8xf32, #tpu.memory_space<vmem>>, vector<1x8x8xf32>,
    %83 = vector.extract_strided_slice %6 {offsets = [0, 112], sizes = [8, 8], strides = [1, 1]} : vector<16x192xf32> to vector<8x8xf32>
    %c6_56 = arith.constant 6 : index
    %c0_57 = arith.constant 0 : index
    %c0_58 = arith.constant 0 : index
    %84 = vector.load %arg8[%c6_56, %c0_57, %c0_58] : memref<16x8x8xf32, #tpu.memory_space<vmem>>, vector<1x8x8xf32>
    %85 = vector.shape_cast %84 : vector<1x8x8xf32> to vector<8x8xf32>
    %86 = vector.shape_cast %83 : vector<8x8xf32> to vector<1x8x8xf32>
    tpu.vector_store %arg8[%c6_56, %c0_57, %c0_58], %86 {strides = array<i32>} : memref<16x8x8xf32, #tpu.memory_space<vmem>>, vector<1x8x8xf32>,
    %87 = vector.extract_strided_slice %6 {offsets = [0, 176], sizes = [8, 8], strides = [1, 1]} : vector<16x192xf32> to vector<8x8xf32>
    %c6_59 = arith.constant 6 : index
    %c0_60 = arith.constant 0 : index
    %c0_61 = arith.constant 0 : index
    %88 = vector.load %arg9[%c6_59, %c0_60, %c0_61] : memref<16x8x8xf32, #tpu.memory_space<vmem>>, vector<1x8x8xf32>
    %89 = vector.shape_cast %88 : vector<1x8x8xf32> to vector<8x8xf32>
    %90 = vector.shape_cast %87 : vector<8x8xf32> to vector<1x8x8xf32>
    tpu.vector_store %arg9[%c6_59, %c0_60, %c0_61], %90 {strides = array<i32>} : memref<16x8x8xf32, #tpu.memory_space<vmem>>, vector<1x8x8xf32>,
    %91 = vector.extract_strided_slice %6 {offsets = [0, 56], sizes = [8, 8], strides = [1, 1]} : vector<16x192xf32> to vector<8x8xf32>
    %c7 = arith.constant 7 : index
    %c0_62 = arith.constant 0 : index
    %c0_63 = arith.constant 0 : index
    %92 = vector.load %arg7[%c7, %c0_62, %c0_63] : memref<16x8x8xf32, #tpu.memory_space<vmem>>, vector<1x8x8xf32>
    %93 = vector.shape_cast %92 : vector<1x8x8xf32> to vector<8x8xf32>
    %94 = vector.shape_cast %91 : vector<8x8xf32> to vector<1x8x8xf32>
    tpu.vector_store %arg7[%c7, %c0_62, %c0_63], %94 {strides = array<i32>} : memref<16x8x8xf32, #tpu.memory_space<vmem>>, vector<1x8x8xf32>,
    %95 = vector.extract_strided_slice %6 {offsets = [0, 120], sizes = [8, 8], strides = [1, 1]} : vector<16x192xf32> to vector<8x8xf32>
    %c7_64 = arith.constant 7 : index
    %c0_65 = arith.constant 0 : index
    %c0_66 = arith.constant 0 : index
    %96 = vector.load %arg8[%c7_64, %c0_65, %c0_66] : memref<16x8x8xf32, #tpu.memory_space<vmem>>, vector<1x8x8xf32>
    %97 = vector.shape_cast %96 : vector<1x8x8xf32> to vector<8x8xf32>
    %98 = vector.shape_cast %95 : vector<8x8xf32> to vector<1x8x8xf32>
    tpu.vector_store %arg8[%c7_64, %c0_65, %c0_66], %98 {strides = array<i32>} : memref<16x8x8xf32, #tpu.memory_space<vmem>>, vector<1x8x8xf32>,
    %99 = vector.extract_strided_slice %6 {offsets = [0, 184], sizes = [8, 8], strides = [1, 1]} : vector<16x192xf32> to vector<8x8xf32>
    %c7_67 = arith.constant 7 : index
    %c0_68 = arith.constant 0 : index
    %c0_69 = arith.constant 0 : index
    %100 = vector.load %arg9[%c7_67, %c0_68, %c0_69] : memref<16x8x8xf32, #tpu.memory_space<vmem>>, vector<1x8x8xf32>
    %101 = vector.shape_cast %100 : vector<1x8x8xf32> to vector<8x8xf32>
    %102 = vector.shape_cast %99 : vector<8x8xf32> to vector<1x8x8xf32>
    tpu.vector_store %arg9[%c7_67, %c0_68, %c0_69], %102 {strides = array<i32>} : memref<16x8x8xf32, #tpu.memory_space<vmem>>, vector<1x8x8xf32>,
    %103 = vector.extract_strided_slice %6 {offsets = [8, 0], sizes = [8, 8], strides = [1, 1]} : vector<16x192xf32> to vector<8x8xf32>
    %c8 = arith.constant 8 : index
    %c0_70 = arith.constant 0 : index
    %c0_71 = arith.constant 0 : index
    %104 = vector.load %arg7[%c8, %c0_70, %c0_71] : memref<16x8x8xf32, #tpu.memory_space<vmem>>, vector<1x8x8xf32>
    %105 = vector.shape_cast %104 : vector<1x8x8xf32> to vector<8x8xf32>
    %106 = vector.shape_cast %103 : vector<8x8xf32> to vector<1x8x8xf32>
    tpu.vector_store %arg7[%c8, %c0_70, %c0_71], %106 {strides = array<i32>} : memref<16x8x8xf32, #tpu.memory_space<vmem>>, vector<1x8x8xf32>,
    %107 = vector.extract_strided_slice %6 {offsets = [8, 64], sizes = [8, 8], strides = [1, 1]} : vector<16x192xf32> to vector<8x8xf32>
    %c8_72 = arith.constant 8 : index
    %c0_73 = arith.constant 0 : index
    %c0_74 = arith.constant 0 : index
    %108 = vector.load %arg8[%c8_72, %c0_73, %c0_74] : memref<16x8x8xf32, #tpu.memory_space<vmem>>, vector<1x8x8xf32>
    %109 = vector.shape_cast %108 : vector<1x8x8xf32> to vector<8x8xf32>
    %110 = vector.shape_cast %107 : vector<8x8xf32> to vector<1x8x8xf32>
    tpu.vector_store %arg8[%c8_72, %c0_73, %c0_74], %110 {strides = array<i32>} : memref<16x8x8xf32, #tpu.memory_space<vmem>>, vector<1x8x8xf32>,
    %111 = vector.extract_strided_slice %6 {offsets = [8, 128], sizes = [8, 8], strides = [1, 1]} : vector<16x192xf32> to vector<8x8xf32>
    %c8_75 = arith.constant 8 : index
    %c0_76 = arith.constant 0 : index
    %c0_77 = arith.constant 0 : index
    %112 = vector.load %arg9[%c8_75, %c0_76, %c0_77] : memref<16x8x8xf32, #tpu.memory_space<vmem>>, vector<1x8x8xf32>
    %113 = vector.shape_cast %112 : vector<1x8x8xf32> to vector<8x8xf32>
    %114 = vector.shape_cast %111 : vector<8x8xf32> to vector<1x8x8xf32>
    tpu.vector_store %arg9[%c8_75, %c0_76, %c0_77], %114 {strides = array<i32>} : memref<16x8x8xf32, #tpu.memory_space<vmem>>, vector<1x8x8xf32>,
    %115 = vector.extract_strided_slice %6 {offsets = [8, 8], sizes = [8, 8], strides = [1, 1]} : vector<16x192xf32> to vector<8x8xf32>
    %c9 = arith.constant 9 : index
    %c0_78 = arith.constant 0 : index
    %c0_79 = arith.constant 0 : index
    %116 = vector.load %arg7[%c9, %c0_78, %c0_79] : memref<16x8x8xf32, #tpu.memory_space<vmem>>, vector<1x8x8xf32>
    %117 = vector.shape_cast %116 : vector<1x8x8xf32> to vector<8x8xf32>
    %118 = vector.shape_cast %115 : vector<8x8xf32> to vector<1x8x8xf32>
    tpu.vector_store %arg7[%c9, %c0_78, %c0_79], %118 {strides = array<i32>} : memref<16x8x8xf32, #tpu.memory_space<vmem>>, vector<1x8x8xf32>,
    %119 = vector.extract_strided_slice %6 {offsets = [8, 72], sizes = [8, 8], strides = [1, 1]} : vector<16x192xf32> to vector<8x8xf32>
    %c9_80 = arith.constant 9 : index
    %c0_81 = arith.constant 0 : index
    %c0_82 = arith.constant 0 : index
    %120 = vector.load %arg8[%c9_80, %c0_81, %c0_82] : memref<16x8x8xf32, #tpu.memory_space<vmem>>, vector<1x8x8xf32>
    %121 = vector.shape_cast %120 : vector<1x8x8xf32> to vector<8x8xf32>
    %122 = vector.shape_cast %119 : vector<8x8xf32> to vector<1x8x8xf32>
    tpu.vector_store %arg8[%c9_80, %c0_81, %c0_82], %122 {strides = array<i32>} : memref<16x8x8xf32, #tpu.memory_space<vmem>>, vector<1x8x8xf32>,
    %123 = vector.extract_strided_slice %6 {offsets = [8, 136], sizes = [8, 8], strides = [1, 1]} : vector<16x192xf32> to vector<8x8xf32>
    %c9_83 = arith.constant 9 : index
    %c0_84 = arith.constant 0 : index
    %c0_85 = arith.constant 0 : index
    %124 = vector.load %arg9[%c9_83, %c0_84, %c0_85] : memref<16x8x8xf32, #tpu.memory_space<vmem>>, vector<1x8x8xf32>
    %125 = vector.shape_cast %124 : vector<1x8x8xf32> to vector<8x8xf32>
    %126 = vector.shape_cast %123 : vector<8x8xf32> to vector<1x8x8xf32>
    tpu.vector_store %arg9[%c9_83, %c0_84, %c0_85], %126 {strides = array<i32>} : memref<16x8x8xf32, #tpu.memory_space<vmem>>, vector<1x8x8xf32>,
    %127 = vector.extract_strided_slice %6 {offsets = [8, 16], sizes = [8, 8], strides = [1, 1]} : vector<16x192xf32> to vector<8x8xf32>
    %c10 = arith.constant 10 : index
    %c0_86 = arith.constant 0 : index
    %c0_87 = arith.constant 0 : index
    %128 = vector.load %arg7[%c10, %c0_86, %c0_87] : memref<16x8x8xf32, #tpu.memory_space<vmem>>, vector<1x8x8xf32>
    %129 = vector.shape_cast %128 : vector<1x8x8xf32> to vector<8x8xf32>
    %130 = vector.shape_cast %127 : vector<8x8xf32> to vector<1x8x8xf32>
    tpu.vector_store %arg7[%c10, %c0_86, %c0_87], %130 {strides = array<i32>} : memref<16x8x8xf32, #tpu.memory_space<vmem>>, vector<1x8x8xf32>,
    %131 = vector.extract_strided_slice %6 {offsets = [8, 80], sizes = [8, 8], strides = [1, 1]} : vector<16x192xf32> to vector<8x8xf32>
    %c10_88 = arith.constant 10 : index
    %c0_89 = arith.constant 0 : index
    %c0_90 = arith.constant 0 : index
    %132 = vector.load %arg8[%c10_88, %c0_89, %c0_90] : memref<16x8x8xf32, #tpu.memory_space<vmem>>, vector<1x8x8xf32>
    %133 = vector.shape_cast %132 : vector<1x8x8xf32> to vector<8x8xf32>
    %134 = vector.shape_cast %131 : vector<8x8xf32> to vector<1x8x8xf32>
    tpu.vector_store %arg8[%c10_88, %c0_89, %c0_90], %134 {strides = array<i32>} : memref<16x8x8xf32, #tpu.memory_space<vmem>>, vector<1x8x8xf32>,
    %135 = vector.extract_strided_slice %6 {offsets = [8, 144], sizes = [8, 8], strides = [1, 1]} : vector<16x192xf32> to vector<8x8xf32>
    %c10_91 = arith.constant 10 : index
    %c0_92 = arith.constant 0 : index
    %c0_93 = arith.constant 0 : index
    %136 = vector.load %arg9[%c10_91, %c0_92, %c0_93] : memref<16x8x8xf32, #tpu.memory_space<vmem>>, vector<1x8x8xf32>
    %137 = vector.shape_cast %136 : vector<1x8x8xf32> to vector<8x8xf32>
    %138 = vector.shape_cast %135 : vector<8x8xf32> to vector<1x8x8xf32>
    tpu.vector_store %arg9[%c10_91, %c0_92, %c0_93], %138 {strides = array<i32>} : memref<16x8x8xf32, #tpu.memory_space<vmem>>, vector<1x8x8xf32>,
    %139 = vector.extract_strided_slice %6 {offsets = [8, 24], sizes = [8, 8], strides = [1, 1]} : vector<16x192xf32> to vector<8x8xf32>
    %c11 = arith.constant 11 : index
    %c0_94 = arith.constant 0 : index
    %c0_95 = arith.constant 0 : index
    %140 = vector.load %arg7[%c11, %c0_94, %c0_95] : memref<16x8x8xf32, #tpu.memory_space<vmem>>, vector<1x8x8xf32>
    %141 = vector.shape_cast %140 : vector<1x8x8xf32> to vector<8x8xf32>
    %142 = vector.shape_cast %139 : vector<8x8xf32> to vector<1x8x8xf32>
    tpu.vector_store %arg7[%c11, %c0_94, %c0_95], %142 {strides = array<i32>} : memref<16x8x8xf32, #tpu.memory_space<vmem>>, vector<1x8x8xf32>,
    %143 = vector.extract_strided_slice %6 {offsets = [8, 88], sizes = [8, 8], strides = [1, 1]} : vector<16x192xf32> to vector<8x8xf32>
    %c11_96 = arith.constant 11 : index
    %c0_97 = arith.constant 0 : index
    %c0_98 = arith.constant 0 : index
    %144 = vector.load %arg8[%c11_96, %c0_97, %c0_98] : memref<16x8x8xf32, #tpu.memory_space<vmem>>, vector<1x8x8xf32>
    %145 = vector.shape_cast %144 : vector<1x8x8xf32> to vector<8x8xf32>
    %146 = vector.shape_cast %143 : vector<8x8xf32> to vector<1x8x8xf32>
    tpu.vector_store %arg8[%c11_96, %c0_97, %c0_98], %146 {strides = array<i32>} : memref<16x8x8xf32, #tpu.memory_space<vmem>>, vector<1x8x8xf32>,
    %147 = vector.extract_strided_slice %6 {offsets = [8, 152], sizes = [8, 8], strides = [1, 1]} : vector<16x192xf32> to vector<8x8xf32>
    %c11_99 = arith.constant 11 : index
    %c0_100 = arith.constant 0 : index
    %c0_101 = arith.constant 0 : index
    %148 = vector.load %arg9[%c11_99, %c0_100, %c0_101] : memref<16x8x8xf32, #tpu.memory_space<vmem>>, vector<1x8x8xf32>
    %149 = vector.shape_cast %148 : vector<1x8x8xf32> to vector<8x8xf32>
    %150 = vector.shape_cast %147 : vector<8x8xf32> to vector<1x8x8xf32>
    tpu.vector_store %arg9[%c11_99, %c0_100, %c0_101], %150 {strides = array<i32>} : memref<16x8x8xf32, #tpu.memory_space<vmem>>, vector<1x8x8xf32>,
    %151 = vector.extract_strided_slice %6 {offsets = [8, 32], sizes = [8, 8], strides = [1, 1]} : vector<16x192xf32> to vector<8x8xf32>
    %c12 = arith.constant 12 : index
    %c0_102 = arith.constant 0 : index
    %c0_103 = arith.constant 0 : index
    %152 = vector.load %arg7[%c12, %c0_102, %c0_103] : memref<16x8x8xf32, #tpu.memory_space<vmem>>, vector<1x8x8xf32>
    %153 = vector.shape_cast %152 : vector<1x8x8xf32> to vector<8x8xf32>
    %154 = vector.shape_cast %151 : vector<8x8xf32> to vector<1x8x8xf32>
    tpu.vector_store %arg7[%c12, %c0_102, %c0_103], %154 {strides = array<i32>} : memref<16x8x8xf32, #tpu.memory_space<vmem>>, vector<1x8x8xf32>,
    %155 = vector.extract_strided_slice %6 {offsets = [8, 96], sizes = [8, 8], strides = [1, 1]} : vector<16x192xf32> to vector<8x8xf32>
    %c12_104 = arith.constant 12 : index
    %c0_105 = arith.constant 0 : index
    %c0_106 = arith.constant 0 : index
    %156 = vector.load %arg8[%c12_104, %c0_105, %c0_106] : memref<16x8x8xf32, #tpu.memory_space<vmem>>, vector<1x8x8xf32>
    %157 = vector.shape_cast %156 : vector<1x8x8xf32> to vector<8x8xf32>
    %158 = vector.shape_cast %155 : vector<8x8xf32> to vector<1x8x8xf32>
    tpu.vector_store %arg8[%c12_104, %c0_105, %c0_106], %158 {strides = array<i32>} : memref<16x8x8xf32, #tpu.memory_space<vmem>>, vector<1x8x8xf32>,
    %159 = vector.extract_strided_slice %6 {offsets = [8, 160], sizes = [8, 8], strides = [1, 1]} : vector<16x192xf32> to vector<8x8xf32>
    %c12_107 = arith.constant 12 : index
    %c0_108 = arith.constant 0 : index
    %c0_109 = arith.constant 0 : index
    %160 = vector.load %arg9[%c12_107, %c0_108, %c0_109] : memref<16x8x8xf32, #tpu.memory_space<vmem>>, vector<1x8x8xf32>
    %161 = vector.shape_cast %160 : vector<1x8x8xf32> to vector<8x8xf32>
    %162 = vector.shape_cast %159 : vector<8x8xf32> to vector<1x8x8xf32>
    tpu.vector_store %arg9[%c12_107, %c0_108, %c0_109], %162 {strides = array<i32>} : memref<16x8x8xf32, #tpu.memory_space<vmem>>, vector<1x8x8xf32>,
    %163 = vector.extract_strided_slice %6 {offsets = [8, 40], sizes = [8, 8], strides = [1, 1]} : vector<16x192xf32> to vector<8x8xf32>
    %c13 = arith.constant 13 : index
    %c0_110 = arith.constant 0 : index
    %c0_111 = arith.constant 0 : index
    %164 = vector.load %arg7[%c13, %c0_110, %c0_111] : memref<16x8x8xf32, #tpu.memory_space<vmem>>, vector<1x8x8xf32>
    %165 = vector.shape_cast %164 : vector<1x8x8xf32> to vector<8x8xf32>
    %166 = vector.shape_cast %163 : vector<8x8xf32> to vector<1x8x8xf32>
    tpu.vector_store %arg7[%c13, %c0_110, %c0_111], %166 {strides = array<i32>} : memref<16x8x8xf32, #tpu.memory_space<vmem>>, vector<1x8x8xf32>,
    %167 = vector.extract_strided_slice %6 {offsets = [8, 104], sizes = [8, 8], strides = [1, 1]} : vector<16x192xf32> to vector<8x8xf32>
    %c13_112 = arith.constant 13 : index
    %c0_113 = arith.constant 0 : index
    %c0_114 = arith.constant 0 : index
    %168 = vector.load %arg8[%c13_112, %c0_113, %c0_114] : memref<16x8x8xf32, #tpu.memory_space<vmem>>, vector<1x8x8xf32>
    %169 = vector.shape_cast %168 : vector<1x8x8xf32> to vector<8x8xf32>
    %170 = vector.shape_cast %167 : vector<8x8xf32> to vector<1x8x8xf32>
    tpu.vector_store %arg8[%c13_112, %c0_113, %c0_114], %170 {strides = array<i32>} : memref<16x8x8xf32, #tpu.memory_space<vmem>>, vector<1x8x8xf32>,
    %171 = vector.extract_strided_slice %6 {offsets = [8, 168], sizes = [8, 8], strides = [1, 1]} : vector<16x192xf32> to vector<8x8xf32>
    %c13_115 = arith.constant 13 : index
    %c0_116 = arith.constant 0 : index
    %c0_117 = arith.constant 0 : index
    %172 = vector.load %arg9[%c13_115, %c0_116, %c0_117] : memref<16x8x8xf32, #tpu.memory_space<vmem>>, vector<1x8x8xf32>
    %173 = vector.shape_cast %172 : vector<1x8x8xf32> to vector<8x8xf32>
    %174 = vector.shape_cast %171 : vector<8x8xf32> to vector<1x8x8xf32>
    tpu.vector_store %arg9[%c13_115, %c0_116, %c0_117], %174 {strides = array<i32>} : memref<16x8x8xf32, #tpu.memory_space<vmem>>, vector<1x8x8xf32>,
    %175 = vector.extract_strided_slice %6 {offsets = [8, 48], sizes = [8, 8], strides = [1, 1]} : vector<16x192xf32> to vector<8x8xf32>
    %c14 = arith.constant 14 : index
    %c0_118 = arith.constant 0 : index
    %c0_119 = arith.constant 0 : index
    %176 = vector.load %arg7[%c14, %c0_118, %c0_119] : memref<16x8x8xf32, #tpu.memory_space<vmem>>, vector<1x8x8xf32>
    %177 = vector.shape_cast %176 : vector<1x8x8xf32> to vector<8x8xf32>
    %178 = vector.shape_cast %175 : vector<8x8xf32> to vector<1x8x8xf32>
    tpu.vector_store %arg7[%c14, %c0_118, %c0_119], %178 {strides = array<i32>} : memref<16x8x8xf32, #tpu.memory_space<vmem>>, vector<1x8x8xf32>,
    %179 = vector.extract_strided_slice %6 {offsets = [8, 112], sizes = [8, 8], strides = [1, 1]} : vector<16x192xf32> to vector<8x8xf32>
    %c14_120 = arith.constant 14 : index
    %c0_121 = arith.constant 0 : index
    %c0_122 = arith.constant 0 : index
    %180 = vector.load %arg8[%c14_120, %c0_121, %c0_122] : memref<16x8x8xf32, #tpu.memory_space<vmem>>, vector<1x8x8xf32>
    %181 = vector.shape_cast %180 : vector<1x8x8xf32> to vector<8x8xf32>
    %182 = vector.shape_cast %179 : vector<8x8xf32> to vector<1x8x8xf32>
    tpu.vector_store %arg8[%c14_120, %c0_121, %c0_122], %182 {strides = array<i32>} : memref<16x8x8xf32, #tpu.memory_space<vmem>>, vector<1x8x8xf32>,
    %183 = vector.extract_strided_slice %6 {offsets = [8, 176], sizes = [8, 8], strides = [1, 1]} : vector<16x192xf32> to vector<8x8xf32>
    %c14_123 = arith.constant 14 : index
    %c0_124 = arith.constant 0 : index
    %c0_125 = arith.constant 0 : index
    %184 = vector.load %arg9[%c14_123, %c0_124, %c0_125] : memref<16x8x8xf32, #tpu.memory_space<vmem>>, vector<1x8x8xf32>
    %185 = vector.shape_cast %184 : vector<1x8x8xf32> to vector<8x8xf32>
    %186 = vector.shape_cast %183 : vector<8x8xf32> to vector<1x8x8xf32>
    tpu.vector_store %arg9[%c14_123, %c0_124, %c0_125], %186 {strides = array<i32>} : memref<16x8x8xf32, #tpu.memory_space<vmem>>, vector<1x8x8xf32>,
    %187 = vector.extract_strided_slice %6 {offsets = [8, 56], sizes = [8, 8], strides = [1, 1]} : vector<16x192xf32> to vector<8x8xf32>
    %c15 = arith.constant 15 : index
    %c0_126 = arith.constant 0 : index
    %c0_127 = arith.constant 0 : index
    %188 = vector.load %arg7[%c15, %c0_126, %c0_127] : memref<16x8x8xf32, #tpu.memory_space<vmem>>, vector<1x8x8xf32>
    %189 = vector.shape_cast %188 : vector<1x8x8xf32> to vector<8x8xf32>
    %190 = vector.shape_cast %187 : vector<8x8xf32> to vector<1x8x8xf32>
    tpu.vector_store %arg7[%c15, %c0_126, %c0_127], %190 {strides = array<i32>} : memref<16x8x8xf32, #tpu.memory_space<vmem>>, vector<1x8x8xf32>,
    %191 = vector.extract_strided_slice %6 {offsets = [8, 120], sizes = [8, 8], strides = [1, 1]} : vector<16x192xf32> to vector<8x8xf32>
    %c15_128 = arith.constant 15 : index
    %c0_129 = arith.constant 0 : index
    %c0_130 = arith.constant 0 : index
    %192 = vector.load %arg8[%c15_128, %c0_129, %c0_130] : memref<16x8x8xf32, #tpu.memory_space<vmem>>, vector<1x8x8xf32>
    %193 = vector.shape_cast %192 : vector<1x8x8xf32> to vector<8x8xf32>
    %194 = vector.shape_cast %191 : vector<8x8xf32> to vector<1x8x8xf32>
    tpu.vector_store %arg8[%c15_128, %c0_129, %c0_130], %194 {strides = array<i32>} : memref<16x8x8xf32, #tpu.memory_space<vmem>>, vector<1x8x8xf32>,
    %195 = vector.extract_strided_slice %6 {offsets = [8, 184], sizes = [8, 8], strides = [1, 1]} : vector<16x192xf32> to vector<8x8xf32>
    %c15_131 = arith.constant 15 : index
    %c0_132 = arith.constant 0 : index
    %c0_133 = arith.constant 0 : index
    %196 = vector.load %arg9[%c15_131, %c0_132, %c0_133] : memref<16x8x8xf32, #tpu.memory_space<vmem>>, vector<1x8x8xf32>
    %197 = vector.shape_cast %196 : vector<1x8x8xf32> to vector<8x8xf32>
    %198 = vector.shape_cast %195 : vector<8x8xf32> to vector<1x8x8xf32>
    tpu.vector_store %arg9[%c15_131, %c0_132, %c0_133], %198 {strides = array<i32>} : memref<16x8x8xf32, #tpu.memory_space<vmem>>, vector<1x8x8xf32>,
    %c0_134 = arith.constant 0 : index
    %c0_135 = arith.constant 0 : index
    %c0_136 = arith.constant 0 : index
    %199 = vector.load %arg7[%c0_134, %c0_135, %c0_136] : memref<16x8x8xf32, #tpu.memory_space<vmem>>, vector<16x8x8xf32>
    %200 = arith.truncf %199 : vector<16x8x8xf32> to vector<16x8x8xbf16>
    %c0_137 = arith.constant 0 : index
    %c0_138 = arith.constant 0 : index
    %c0_139 = arith.constant 0 : index
    %201 = vector.load %arg8[%c0_137, %c0_138, %c0_139] : memref<16x8x8xf32, #tpu.memory_space<vmem>>, vector<16x8x8xf32>
    %202 = arith.truncf %201 : vector<16x8x8xf32> to vector<16x8x8xbf16>
    %c0_140 = arith.constant 0 : index
    %c0_141 = arith.constant 0 : index
    %c0_142 = arith.constant 0 : index
    %203 = vector.load %arg9[%c0_140, %c0_141, %c0_142] : memref<16x8x8xf32, #tpu.memory_space<vmem>>, vector<16x8x8xf32>
    %204 = arith.truncf %203 : vector<16x8x8xf32> to vector<16x8x8xbf16>
    "tpu.trace_start"() <{level = 10 : i32, message = "bqd,bkd->bqk"}> : () -> ()
    %cst_143 = arith.constant dense<0.000000e+00> : vector<16x8x8xf32>
    %205 = tpu.matmul %200, %202, %cst_143 {dimension_numbers = #tpu.dot_dimension_numbers<[2], [2], [1], [1], [0, 0, 0, 1, 1, 1], [0], [0]>} : vector<16x8x8xbf16>, vector<16x8x8xbf16>, vector<16x8x8xf32> -> vector<16x8x8xf32>
    "tpu.trace_stop"() : () -> ()
    %cst_144 = arith.constant dense<0xFF800000> : vector<16x8xf32>
    %206 = vector.multi_reduction <maximumf>, %205, %cst_144 [2] : vector<16x8x8xf32> to vector<16x8xf32>
    %207 = vector.shape_cast %206 : vector<16x8xf32> to vector<16x8x1xf32>
    %208 = vector.broadcast %207 : vector<16x8x1xf32> to vector<16x8x8xf32>
    %209 = arith.subf %205, %208 : vector<16x8x8xf32>
    %210 = math.exp %209 : vector<16x8x8xf32>
    %cst_145 = arith.constant dense<0.000000e+00> : vector<16x8xf32>
    %211 = vector.multi_reduction <add>, %210, %cst_145 [2] : vector<16x8x8xf32> to vector<16x8xf32>
    %212 = vector.shape_cast %211 : vector<16x8xf32> to vector<16x8x1xf32>
    %213 = tpu.reciprocal %212 {approx = true} : vector<16x8x1xf32> -> vector<16x8x1xf32>
    %214 = vector.broadcast %213 : vector<16x8x1xf32> to vector<16x8x8xf32>
    %215 = arith.mulf %210, %214 : vector<16x8x8xf32>
    %216 = arith.truncf %215 : vector<16x8x8xf32> to vector<16x8x8xbf16>
    "tpu.trace_start"() <{level = 10 : i32, message = "bqk,bkd->bqd"}> : () -> ()
    %cst_146 = arith.constant dense<0.000000e+00> : vector<16x8x8xf32>
    %217 = tpu.matmul %216, %204, %cst_146 {dimension_numbers = #tpu.dot_dimension_numbers<[2], [1], [1], [2], [0, 0, 0, 1, 1, 2], [0], [0]>} : vector<16x8x8xbf16>, vector<16x8x8xbf16>, vector<16x8x8xf32> -> vector<16x8x8xf32>
    "tpu.trace_stop"() : () -> ()
    %218 = vector.extract_strided_slice %217 {offsets = [0, 0, 0], sizes = [1, 8, 8], strides = [1, 1, 1]} : vector<16x8x8xf32> to vector<1x8x8xf32>
    %219 = vector.shape_cast %218 : vector<1x8x8xf32> to vector<8x8xf32>
    %c0_147 = arith.constant 0 : index
    %c0_148 = arith.constant 0 : index
    %220 = vector.load %arg10[%c0_147, %c0_148] : memref<16x64xf32, #tpu.memory_space<vmem>>, vector<8x8xf32>
    tpu.vector_store %arg10[%c0_147, %c0_148], %219 {strides = array<i32>} : memref<16x64xf32, #tpu.memory_space<vmem>>, vector<8x8xf32>,
    %221 = vector.extract_strided_slice %217 {offsets = [1, 0, 0], sizes = [1, 8, 8], strides = [1, 1, 1]} : vector<16x8x8xf32> to vector<1x8x8xf32>
    %222 = vector.shape_cast %221 : vector<1x8x8xf32> to vector<8x8xf32>
    %c0_149 = arith.constant 0 : index
    %c8_150 = arith.constant 8 : index
    %223 = vector.load %arg10[%c0_149, %c8_150] : memref<16x64xf32, #tpu.memory_space<vmem>>, vector<8x8xf32>
    tpu.vector_store %arg10[%c0_149, %c8_150], %222 {strides = array<i32>} : memref<16x64xf32, #tpu.memory_space<vmem>>, vector<8x8xf32>,
    %224 = vector.extract_strided_slice %217 {offsets = [2, 0, 0], sizes = [1, 8, 8], strides = [1, 1, 1]} : vector<16x8x8xf32> to vector<1x8x8xf32>
    %225 = vector.shape_cast %224 : vector<1x8x8xf32> to vector<8x8xf32>
    %c0_151 = arith.constant 0 : index
    %c16 = arith.constant 16 : index
    %226 = vector.load %arg10[%c0_151, %c16] : memref<16x64xf32, #tpu.memory_space<vmem>>, vector<8x8xf32>
    tpu.vector_store %arg10[%c0_151, %c16], %225 {strides = array<i32>} : memref<16x64xf32, #tpu.memory_space<vmem>>, vector<8x8xf32>,
    %227 = vector.extract_strided_slice %217 {offsets = [3, 0, 0], sizes = [1, 8, 8], strides = [1, 1, 1]} : vector<16x8x8xf32> to vector<1x8x8xf32>
    %228 = vector.shape_cast %227 : vector<1x8x8xf32> to vector<8x8xf32>
    %c0_152 = arith.constant 0 : index
    %c24 = arith.constant 24 : index
    %229 = vector.load %arg10[%c0_152, %c24] : memref<16x64xf32, #tpu.memory_space<vmem>>, vector<8x8xf32>
    tpu.vector_store %arg10[%c0_152, %c24], %228 {strides = array<i32>} : memref<16x64xf32, #tpu.memory_space<vmem>>, vector<8x8xf32>,
    %230 = vector.extract_strided_slice %217 {offsets = [4, 0, 0], sizes = [1, 8, 8], strides = [1, 1, 1]} : vector<16x8x8xf32> to vector<1x8x8xf32>
    %231 = vector.shape_cast %230 : vector<1x8x8xf32> to vector<8x8xf32>
    %c0_153 = arith.constant 0 : index
    %c32 = arith.constant 32 : index
    %232 = vector.load %arg10[%c0_153, %c32] : memref<16x64xf32, #tpu.memory_space<vmem>>, vector<8x8xf32>
    tpu.vector_store %arg10[%c0_153, %c32], %231 {strides = array<i32>} : memref<16x64xf32, #tpu.memory_space<vmem>>, vector<8x8xf32>,
    %233 = vector.extract_strided_slice %217 {offsets = [5, 0, 0], sizes = [1, 8, 8], strides = [1, 1, 1]} : vector<16x8x8xf32> to vector<1x8x8xf32>
    %234 = vector.shape_cast %233 : vector<1x8x8xf32> to vector<8x8xf32>
    %c0_154 = arith.constant 0 : index
    %c40 = arith.constant 40 : index
    %235 = vector.load %arg10[%c0_154, %c40] : memref<16x64xf32, #tpu.memory_space<vmem>>, vector<8x8xf32>
    tpu.vector_store %arg10[%c0_154, %c40], %234 {strides = array<i32>} : memref<16x64xf32, #tpu.memory_space<vmem>>, vector<8x8xf32>,
    %236 = vector.extract_strided_slice %217 {offsets = [6, 0, 0], sizes = [1, 8, 8], strides = [1, 1, 1]} : vector<16x8x8xf32> to vector<1x8x8xf32>
    %237 = vector.shape_cast %236 : vector<1x8x8xf32> to vector<8x8xf32>
    %c0_155 = arith.constant 0 : index
    %c48 = arith.constant 48 : index
    %238 = vector.load %arg10[%c0_155, %c48] : memref<16x64xf32, #tpu.memory_space<vmem>>, vector<8x8xf32>
    tpu.vector_store %arg10[%c0_155, %c48], %237 {strides = array<i32>} : memref<16x64xf32, #tpu.memory_space<vmem>>, vector<8x8xf32>,
    %239 = vector.extract_strided_slice %217 {offsets = [7, 0, 0], sizes = [1, 8, 8], strides = [1, 1, 1]} : vector<16x8x8xf32> to vector<1x8x8xf32>
    %240 = vector.shape_cast %239 : vector<1x8x8xf32> to vector<8x8xf32>
    %c0_156 = arith.constant 0 : index
    %c56 = arith.constant 56 : index
    %241 = vector.load %arg10[%c0_156, %c56] : memref<16x64xf32, #tpu.memory_space<vmem>>, vector<8x8xf32>
    tpu.vector_store %arg10[%c0_156, %c56], %240 {strides = array<i32>} : memref<16x64xf32, #tpu.memory_space<vmem>>, vector<8x8xf32>,
    %242 = vector.extract_strided_slice %217 {offsets = [8, 0, 0], sizes = [1, 8, 8], strides = [1, 1, 1]} : vector<16x8x8xf32> to vector<1x8x8xf32>
    %243 = vector.shape_cast %242 : vector<1x8x8xf32> to vector<8x8xf32>
    %c8_157 = arith.constant 8 : index
    %c0_158 = arith.constant 0 : index
    %244 = vector.load %arg10[%c8_157, %c0_158] : memref<16x64xf32, #tpu.memory_space<vmem>>, vector<8x8xf32>
    tpu.vector_store %arg10[%c8_157, %c0_158], %243 {strides = array<i32>} : memref<16x64xf32, #tpu.memory_space<vmem>>, vector<8x8xf32>,
    %245 = vector.extract_strided_slice %217 {offsets = [9, 0, 0], sizes = [1, 8, 8], strides = [1, 1, 1]} : vector<16x8x8xf32> to vector<1x8x8xf32>
    %246 = vector.shape_cast %245 : vector<1x8x8xf32> to vector<8x8xf32>
    %c8_159 = arith.constant 8 : index
    %c8_160 = arith.constant 8 : index
    %247 = vector.load %arg10[%c8_159, %c8_160] : memref<16x64xf32, #tpu.memory_space<vmem>>, vector<8x8xf32>
    tpu.vector_store %arg10[%c8_159, %c8_160], %246 {strides = array<i32>} : memref<16x64xf32, #tpu.memory_space<vmem>>, vector<8x8xf32>,
    %248 = vector.extract_strided_slice %217 {offsets = [10, 0, 0], sizes = [1, 8, 8], strides = [1, 1, 1]} : vector<16x8x8xf32> to vector<1x8x8xf32>
    %249 = vector.shape_cast %248 : vector<1x8x8xf32> to vector<8x8xf32>
    %c8_161 = arith.constant 8 : index
    %c16_162 = arith.constant 16 : index
    %250 = vector.load %arg10[%c8_161, %c16_162] : memref<16x64xf32, #tpu.memory_space<vmem>>, vector<8x8xf32>
    tpu.vector_store %arg10[%c8_161, %c16_162], %249 {strides = array<i32>} : memref<16x64xf32, #tpu.memory_space<vmem>>, vector<8x8xf32>,
    %251 = vector.extract_strided_slice %217 {offsets = [11, 0, 0], sizes = [1, 8, 8], strides = [1, 1, 1]} : vector<16x8x8xf32> to vector<1x8x8xf32>
    %252 = vector.shape_cast %251 : vector<1x8x8xf32> to vector<8x8xf32>
    %c8_163 = arith.constant 8 : index
    %c24_164 = arith.constant 24 : index
    %253 = vector.load %arg10[%c8_163, %c24_164] : memref<16x64xf32, #tpu.memory_space<vmem>>, vector<8x8xf32>
    tpu.vector_store %arg10[%c8_163, %c24_164], %252 {strides = array<i32>} : memref<16x64xf32, #tpu.memory_space<vmem>>, vector<8x8xf32>,
    %254 = vector.extract_strided_slice %217 {offsets = [12, 0, 0], sizes = [1, 8, 8], strides = [1, 1, 1]} : vector<16x8x8xf32> to vector<1x8x8xf32>
    %255 = vector.shape_cast %254 : vector<1x8x8xf32> to vector<8x8xf32>
    %c8_165 = arith.constant 8 : index
    %c32_166 = arith.constant 32 : index
    %256 = vector.load %arg10[%c8_165, %c32_166] : memref<16x64xf32, #tpu.memory_space<vmem>>, vector<8x8xf32>
    tpu.vector_store %arg10[%c8_165, %c32_166], %255 {strides = array<i32>} : memref<16x64xf32, #tpu.memory_space<vmem>>, vector<8x8xf32>,
    %257 = vector.extract_strided_slice %217 {offsets = [13, 0, 0], sizes = [1, 8, 8], strides = [1, 1, 1]} : vector<16x8x8xf32> to vector<1x8x8xf32>
    %258 = vector.shape_cast %257 : vector<1x8x8xf32> to vector<8x8xf32>
    %c8_167 = arith.constant 8 : index
    %c40_168 = arith.constant 40 : index
    %259 = vector.load %arg10[%c8_167, %c40_168] : memref<16x64xf32, #tpu.memory_space<vmem>>, vector<8x8xf32>
    tpu.vector_store %arg10[%c8_167, %c40_168], %258 {strides = array<i32>} : memref<16x64xf32, #tpu.memory_space<vmem>>, vector<8x8xf32>,
    %260 = vector.extract_strided_slice %217 {offsets = [14, 0, 0], sizes = [1, 8, 8], strides = [1, 1, 1]} : vector<16x8x8xf32> to vector<1x8x8xf32>
    %261 = vector.shape_cast %260 : vector<1x8x8xf32> to vector<8x8xf32>
    %c8_169 = arith.constant 8 : index
    %c48_170 = arith.constant 48 : index
    %262 = vector.load %arg10[%c8_169, %c48_170] : memref<16x64xf32, #tpu.memory_space<vmem>>, vector<8x8xf32>
    tpu.vector_store %arg10[%c8_169, %c48_170], %261 {strides = array<i32>} : memref<16x64xf32, #tpu.memory_space<vmem>>, vector<8x8xf32>,
    %263 = vector.extract_strided_slice %217 {offsets = [15, 0, 0], sizes = [1, 8, 8], strides = [1, 1, 1]} : vector<16x8x8xf32> to vector<1x8x8xf32>
    %264 = vector.shape_cast %263 : vector<1x8x8xf32> to vector<8x8xf32>
    %c8_171 = arith.constant 8 : index
    %c56_172 = arith.constant 56 : index
    %265 = vector.load %arg10[%c8_171, %c56_172] : memref<16x64xf32, #tpu.memory_space<vmem>>, vector<8x8xf32>
    tpu.vector_store %arg10[%c8_171, %c56_172], %264 {strides = array<i32>} : memref<16x64xf32, #tpu.memory_space<vmem>>, vector<8x8xf32>,
    %c0_173 = arith.constant 0 : index
    %c0_174 = arith.constant 0 : index
    %266 = vector.load %arg10[%c0_173, %c0_174] : memref<16x64xf32, #tpu.memory_space<vmem>>, vector<16x64xf32>
    %267 = arith.truncf %266 : vector<16x64xf32> to vector<16x64xbf16>
    %c0_175 = arith.constant 0 : index
    %c0_176 = arith.constant 0 : index
    %268 = vector.load %arg4[%c0_175, %c0_176] : memref<64x64xbf16, #tpu.memory_space<vmem>>, vector<64x64xbf16>
    %cst_177 = arith.constant dense<0.000000e+00> : vector<16x64xf32>
    %269 = tpu.matmul %267, %268, %cst_177 {dimension_numbers = #tpu.dot_dimension_numbers<[1], [0], [0], [1], [0, 0, 1, 1], [], []>} : vector<16x64xbf16>, vector<64x64xbf16>, vector<16x64xf32> -> vector<16x64xf32>
    %c0_178 = arith.constant 0 : index
    %c0_179 = arith.constant 0 : index
    %270 = vector.load %arg5[%c0_178, %c0_179] : memref<1x64xf32, #tpu.memory_space<vmem>>, vector<1x64xf32>
    %271 = vector.broadcast %270 : vector<1x64xf32> to vector<16x64xf32>
    %272 = arith.addf %269, %271 : vector<16x64xf32>
    %c0_180 = arith.constant 0 : index
    %c0_181 = arith.constant 0 : index
    %273 = vector.load %arg6[%c0_180, %c0_181] : memref<16x64xf32, #tpu.memory_space<vmem>>, vector<16x64xf32>
    tpu.vector_store %arg6[%c0_180, %c0_181], %272 {strides = array<i32>} : memref<16x64xf32, #tpu.memory_space<vmem>>, vector<16x64xf32>,
    return
  }
  func.func @transform_0(%arg0: i32) -> (i32, i32) {
    %c0_i32 = arith.constant 0 : i32
    %c0_i32_0 = arith.constant 0 : i32
    return %arg0, %c0_i32 : i32, i32
  }
  func.func @transform_1(%arg0: i32) -> (i32, i32) {
    %c0_i32 = arith.constant 0 : i32
    %c0_i32_0 = arith.constant 0 : i32
    %c0_i32_1 = arith.constant 0 : i32
    return %c0_i32, %c0_i32_0 : i32, i32
  }
  func.func @transform_2(%arg0: i32) -> (i32, i32) {
    %c0_i32 = arith.constant 0 : i32
    %c0_i32_0 = arith.constant 0 : i32
    %c0_i32_1 = arith.constant 0 : i32
    return %c0_i32, %c0_i32_0 : i32, i32
  }
  func.func @transform_3(%arg0: i32) -> (i32, i32) {
    %c0_i32 = arith.constant 0 : i32
    %c0_i32_0 = arith.constant 0 : i32
    %c0_i32_1 = arith.constant 0 : i32
    return %c0_i32, %c0_i32_0 : i32, i32
  }
  func.func @transform_4(%arg0: i32) -> (i32, i32) {
    %c0_i32 = arith.constant 0 : i32
    %c0_i32_0 = arith.constant 0 : i32
    %c0_i32_1 = arith.constant 0 : i32
    return %c0_i32, %c0_i32_0 : i32, i32
  }
  func.func @transform_5(%arg0: i32) -> (i32, i32) {
    %c0_i32 = arith.constant 0 : i32
    %c0_i32_0 = arith.constant 0 : i32
    return %arg0, %c0_i32 : i32, i32
  }
}

</mosaic_0001>

<llo_original>
// kernel: mul.9
$region0: #{mul.9}
  #allocation2 [shape = 's32[1]{0}', space=sflag, size = 0x4, scoped, tag = 'scoped memory for mul.9']
  %s0 = inlined_call_operand.hbm [shape: f32[192], index: 0, kind: input, shape index: {}]
  %s1 = inlined_call_operand.vmem [shape: f32[192], index: 1, kind: input, shape index: {}]
  %s2 = inlined_call_operand.vmem [shape: f32[192], index: 2, kind: output, shape index: {}]
  $region1: #{mul.9} parent=0
    #allocation0 [shape = 'u8[1024]{0}', space=vmem, size = 0x400, scoped, tag = 'operand span for operand 0']
    #allocation1 [shape = 's32[1]{0}', space=sflag, size = 0x4, scoped, tag = 'scoped memory for mul.9']
    %3 = vsyncpa [#allocation1], 0
    %5 = vsyncadd [#allocation1], 0
    %s7 = sshll.u32 %s0, 4
    %s8 = int_to_ptr.hbm [resolvable:$true] %s7
    %s9 = sshll.u32 [#allocation0], 4
    %s10 = int_to_ptr.vmem [resolvable:$true] %s9
    %12 = dma.hbm_to_vmem [thread:$0]  %s8, 32, %s10, [#allocation1]
    %14 = dma.done [#allocation1], 32
    %v15 = vld [vmem:[#allocation0] sm:$0x3]
    %v16 = vld [vmem:[%s1] sm:$0x3]
    %17 = xla_tuple %v15, %v16
    %18 = xla_tuple %17
    %v19 = vmul.f32 %v15, %v16
    %20 = xla_tuple %v19
    %21 = vst [vmem:[%s2] sm:$0x3] %v19
    %22 = vsyncpa [#allocation1], 1

// kernel: multi_head_self_attention.1
$region0: #{multi_head_self_attention.1}
  #allocation0 [shape = 'u32[]', space=smem, size = 0x4, offset = 0x4, fixed_abs, tag = 'smem constant byte address 0x4 - core index']
  #allocation1 [shape = 'u32[72,128]{1,0:T(1,128)}', space=vmem, size = 0x9000, scoped, tag = 'internal scratch']
  #allocation2 [shape = 'f32[16,8,8]{2,1,0:T(8,128)}', space=vmem, size = 0x10000, scoped, tag = 'scratch operand']
  #allocation3 [shape = 'f32[16,8,8]{2,1,0:T(8,128)}', space=vmem, size = 0x10000, scoped, tag = 'scratch operand']
  #allocation4 [shape = 'f32[16,8,8]{2,1,0:T(8,128)}', space=vmem, size = 0x10000, scoped, tag = 'scratch operand']
  #allocation5 [shape = 'f32[16,64]{1,0:T(8,128)}', space=vmem, size = 0x2000, scoped, tag = 'scratch operand']
  %s0 = inlined_call_operand.vmem [shape: f32[32,64], index: 0, kind: input, shape index: {}]
  %s1 = inlined_call_operand.vmem [shape: bf16[64,192], index: 1, kind: input, shape index: {}]
  %s2 = inlined_call_operand.vmem [shape: f32[1,192], index: 2, kind: input, shape index: {}]
  %s3 = inlined_call_operand.vmem [shape: bf16[64,64], index: 3, kind: input, shape index: {}]
  %s4 = inlined_call_operand.vmem [shape: f32[1,64], index: 4, kind: input, shape index: {}]
  %s5 = inlined_call_operand.hbm [shape: f32[32,64], index: 5, kind: output, shape index: {}]
  %s6 = sld [smem:[#allocation0]]
  $region53: #{multi_head_self_attention.1} parent=0
    _
  %s8 = ssub.s32 1, %s6
  %s9 = scalar_select 0, %s8, %s6
  $region1: #{multi_head_self_attention.1} parent=0
    #allocation6 [shape = 'u8[16384]{0}', space=vmem, size = 0x4000, scoped, tag = 'output window, operand 0']
    #allocation7 [shape = 's32[2]{0}', space=sflag, size = 0x8, scoped, tag = 'scoped memory for multi_head_self_attention.1']
    %10 = vsyncpa [#allocation7], 0
    %s11 = scalar_lea.sflag [#allocation7], 1
    %12 = vsyncpa %s11, 0
    loop: start=0, step=1, limit=4
    $region2: #{multi_head_self_attention.1} parent=1 // loop_pre_header
      _
    $region3: #{multi_head_self_attention.1} parent=1 // loop_header
      %s14 = sphi 0, %s18
      %p15 = scmp.ge.s32.totalorder %s14, 4
      %s24 = sphi 0, %s26
      %s27 = sphi 0, %s24
      %s28 = sphi 0, %s27
      %s44 = sphi 0, %s28
      %s48 = sphi 0, %s48
      %s50 = sphi 0, %s48
      %s51 = sphi 0, %s50
      %s65 = sphi 0, %s51
      %s69 = sphi 0, %s69
      %s71 = sphi 0, %s69
      %s72 = sphi 0, %s71
      %s86 = sphi 0, %s72
      %s90 = sphi 0, %s90
      %s92 = sphi 0, %s90
      %s93 = sphi 0, %s92
      %s107 = sphi 0, %s93
      %s111 = sphi 0, %s111
      %s113 = sphi 0, %s111
      %s114 = sphi 0, %s113
      %s128 = sphi 0, %s114
      %s134 = sphi 0, %s136
      %s137 = sphi 0, %s134
      %s138 = sphi 0, %s137
      %s154 = sphi 0, %s138
    $region4: #{multi_head_self_attention.1} parent=1 // loop_header_branch
      %17 = sbr.rel (%p15) target = $region8
    $region5: #{multi_head_self_attention.1} parent=1 // loop_body
      %s19 = ssub.s32 %s14, 1
      %s20 = ssub.s32 %s14, 2
      %s21 = sadd.s32 %s14, 1
      %s22 = ssub.s32 %s14, %s21
      %p23 = scmp.eq.s32.totalorder %s22, 0
      %s25 = sadd.s32 %s24, 1
      %s26 = scalar_select %p23, %s24, %s25
      %p29 = pneg %p23
      %p30 = scmp.eq.s32.totalorder %s14, 1
      %p31 = por %p29, %p30
      %p32 = scmp.ne.s32.totalorder %s24, %s27
      %p33 = scmp.eq.s32.totalorder %s14, 0
      %p34 = por %p32, %p33
      %p35 = scmp.ne.s32.totalorder %s24, %s27
      %p36 = scmp.eq.s32.totalorder %s19, 1
      %p37 = por %p35, %p36
      %p38 = scmp.ne.s32.totalorder %s27, %s28
      %p39 = scmp.eq.s32.totalorder %s19, 0
      %p40 = por %p38, %p39
      %p41 = scmp.ne.s32.totalorder %s27, %s28
      %p42 = scmp.eq.s32.totalorder %s20, 1
      %p43 = por %p41, %p42
      %p45 = scmp.ne.s32.totalorder %s28, %s44
      %p46 = scmp.eq.s32.totalorder %s20, 0
      %p47 = por %p45, %p46
      %s49 = sadd.s32 %s48, 1
      %p52 = scmp.eq.s32.totalorder %s14, 1
      %p53 = scmp.ne.s32.totalorder %s48, %s50
      %p54 = scmp.eq.s32.totalorder %s14, 0
      %p55 = por %p53, %p54
      %p56 = scmp.ne.s32.totalorder %s48, %s50
      %p57 = scmp.eq.s32.totalorder %s19, 1
      %p58 = por %p56, %p57
      %p59 = scmp.ne.s32.totalorder %s50, %s51
      %p60 = scmp.eq.s32.totalorder %s19, 0
      %p61 = por %p59, %p60
      %p62 = scmp.ne.s32.totalorder %s50, %s51
      %p63 = scmp.eq.s32.totalorder %s20, 1
      %p64 = por %p62, %p63
      %p66 = scmp.ne.s32.totalorder %s51, %s65
      %p67 = scmp.eq.s32.totalorder %s20, 0
      %p68 = por %p66, %p67
      %s70 = sadd.s32 %s69, 1
      %p73 = scmp.eq.s32.totalorder %s14, 1
      %p74 = scmp.ne.s32.totalorder %s69, %s71
      %p75 = scmp.eq.s32.totalorder %s14, 0
      %p76 = por %p74, %p75
      %p77 = scmp.ne.s32.totalorder %s69, %s71
      %p78 = scmp.eq.s32.totalorder %s19, 1
      %p79 = por %p77, %p78
      %p80 = scmp.ne.s32.totalorder %s71, %s72
      %p81 = scmp.eq.s32.totalorder %s19, 0
      %p82 = por %p80, %p81
      %p83 = scmp.ne.s32.totalorder %s71, %s72
      %p84 = scmp.eq.s32.totalorder %s20, 1
      %p85 = por %p83, %p84
      %p87 = scmp.ne.s32.totalorder %s72, %s86
      %p88 = scmp.eq.s32.totalorder %s20, 0
      %p89 = por %p87, %p88
      %s91 = sadd.s32 %s90, 1
      %p94 = scmp.eq.s32.totalorder %s14, 1
      %p95 = scmp.ne.s32.totalorder %s90, %s92
      %p96 = scmp.eq.s32.totalorder %s14, 0
      %p97 = por %p95, %p96
      %p98 = scmp.ne.s32.totalorder %s90, %s92
      %p99 = scmp.eq.s32.totalorder %s19, 1
      %p100 = por %p98, %p99
      %p101 = scmp.ne.s32.totalorder %s92, %s93
      %p102 = scmp.eq.s32.totalorder %s19, 0
      %p103 = por %p101, %p102
      %p104 = scmp.ne.s32.totalorder %s92, %s93
      %p105 = scmp.eq.s32.totalorder %s20, 1
      %p106 = por %p104, %p105
      %p108 = scmp.ne.s32.totalorder %s93, %s107
      %p109 = scmp.eq.s32.totalorder %s20, 0
      %p110 = por %p108, %p109
      %s112 = sadd.s32 %s111, 1
      %p115 = scmp.eq.s32.totalorder %s14, 1
      %p116 = scmp.ne.s32.totalorder %s111, %s113
      %p117 = scmp.eq.s32.totalorder %s14, 0
      %p118 = por %p116, %p117
      %p119 = scmp.ne.s32.totalorder %s111, %s113
      %p120 = scmp.eq.s32.totalorder %s19, 1
      %p121 = por %p119, %p120
      %p122 = scmp.ne.s32.totalorder %s113, %s114
      %p123 = scmp.eq.s32.totalorder %s19, 0
      %p124 = por %p122, %p123
      %p125 = scmp.ne.s32.totalorder %s113, %s114
      %p126 = scmp.eq.s32.totalorder %s20, 1
      %p127 = por %p125, %p126
      %p129 = scmp.ne.s32.totalorder %s114, %s128
      %p130 = scmp.eq.s32.totalorder %s20, 0
      %p131 = por %p129, %p130
      %s132 = ssub.s32 %s14, %s21
      %p133 = scmp.eq.s32.totalorder %s132, 0
      %s135 = sadd.s32 %s134, 1
      %s136 = scalar_select %p133, %s134, %s135
      %p139 = pneg %p133
      %p140 = scmp.eq.s32.totalorder %s14, 1
      %p141 = por %p139, %p140
      %p142 = scmp.ne.s32.totalorder %s134, %s137
      %p143 = scmp.eq.s32.totalorder %s14, 0
      %p144 = por %p142, %p143
      %p145 = scmp.ne.s32.totalorder %s134, %s137
      %p146 = scmp.eq.s32.totalorder %s19, 1
      %p147 = por %p145, %p146
      %p148 = scmp.ne.s32.totalorder %s137, %s138
      %p149 = scmp.eq.s32.totalorder %s19, 0
      %p150 = por %p148, %p149
      %p151 = scmp.ne.s32.totalorder %s137, %s138
      %p152 = scmp.eq.s32.totalorder %s20, 1
      %p153 = por %p151, %p152
      %p155 = scmp.ne.s32.totalorder %s138, %s154
      %p156 = scmp.eq.s32.totalorder %s20, 0
      %p157 = por %p155, %p156
      %p158 = scmp.le.s32.totalorder 1, %s14
      %p159 = scmp.lt.s32.totalorder %s14, 3
      %p160 = pnand %p158, %p159
      %p161 = pneg %p160
      // Predicated region
      $region9: #{multi_head_self_attention.1} parent=5 // pred_check
        _
      $region10: #{multi_head_self_attention.1} parent=5 // pred_check_branch
        %163 = sbr.rel (%p160) target = $region12
      $region11: #{multi_head_self_attention.1} parent=5 // pred_region
        %s164 = ssub.s32 %s14, 1
        // Predicated region
        $region13: #{multi_head_self_attention.1} parent=11 // pred_check
          %p165 = pneg %p61
        $region14: #{multi_head_self_attention.1} parent=11 // pred_check_branch
          %167 = sbr.rel (%p165) target = $region16
        $region15: #{multi_head_self_attention.1} parent=11 // pred_region
          _
        $region16: #{multi_head_self_attention.1} parent=11 // pred_fallthru
          _
        // Predicated region
        $region17: #{multi_head_self_attention.1} parent=11 // pred_check
          %p168 = pneg %p82
        $region18: #{multi_head_self_attention.1} parent=11 // pred_check_branch
          %170 = sbr.rel (%p168) target = $region20
        $region19: #{multi_head_self_attention.1} parent=11 // pred_region
          _
        $region20: #{multi_head_self_attention.1} parent=11 // pred_fallthru
          _
        // Predicated region
        $region21: #{multi_head_self_attention.1} parent=11 // pred_check
          %p171 = pneg %p103
        $region22: #{multi_head_self_attention.1} parent=11 // pred_check_branch
          %173 = sbr.rel (%p171) target = $region24
        $region23: #{multi_head_self_attention.1} parent=11 // pred_region
          _
        $region24: #{multi_head_self_attention.1} parent=11 // pred_fallthru
          _
        // Predicated region
        $region25: #{multi_head_self_attention.1} parent=11 // pred_check
          %p174 = pneg %p124
        $region26: #{multi_head_self_attention.1} parent=11 // pred_check_branch
          %176 = sbr.rel (%p174) target = $region28
        $region27: #{multi_head_self_attention.1} parent=11 // pred_region
          _
        $region28: #{multi_head_self_attention.1} parent=11 // pred_fallthru
          _
      $region12: #{multi_head_self_attention.1} parent=5 // pred_fallthru
        _
      %p177 = scmp.lt.s32.totalorder %s14, 2
      // Predicated region
      $region29: #{multi_head_self_attention.1} parent=5 // pred_check
        %p178 = pneg %p177
      $region30: #{multi_head_self_attention.1} parent=5 // pred_check_branch
        %180 = sbr.rel (%p178) target = $region32
      $region31: #{multi_head_self_attention.1} parent=5 // pred_region
        // Predicated region
        $region33: #{multi_head_self_attention.1} parent=31 // pred_check
          %p181 = pneg %p34
        $region34: #{multi_head_self_attention.1} parent=31 // pred_check_branch
          %183 = sbr.rel (%p181) target = $region36
        $region35: #{multi_head_self_attention.1} parent=31 // pred_region
          %s184 = smul.u32 2, %s14
          %p185 = scmp.lt.s32.totalorder %s184, 3
          %s186 = scalar_select %p185, %s184, 3
          %s187 = smul.addr %s186, 8
          %s188 = scalar_lea.vmem %s0, %s187
          %s189 = smul.u32 2, %s14
        $region36: #{multi_head_self_attention.1} parent=31 // pred_fallthru
          _
      $region32: #{multi_head_self_attention.1} parent=5 // pred_fallthru
        _
      %p190 = scmp.le.s32.totalorder 1, %s14
      %p191 = scmp.lt.s32.totalorder %s14, 3
      %p192 = pnand %p190, %p191
      %p193 = pneg %p192
      // Predicated region
      $region37: #{multi_head_self_attention.1} parent=5 // pred_check
        _
      $region38: #{multi_head_self_attention.1} parent=5 // pred_check_branch
        %195 = sbr.rel (%p192) target = $region40
      $region39: #{multi_head_self_attention.1} parent=5 // pred_region
        %s196 = ssub.s32 %s14, 1
        %s197 = smul.u32 2, %s19
        %p198 = scmp.lt.s32.totalorder %s197, 3
        %s199 = scalar_select %p198, %s197, 3
        %s200 = smul.addr %s199, 8
        %s201 = scalar_lea.vmem %s0, %s200
        %p202 = pneg %p40
        %p203 = pneg %p37
        %p204 = pneg %p61
        %p205 = pneg %p58
        %p206 = pneg %p82
        %p207 = pneg %p79
        %p208 = pneg %p103
        %p209 = pneg %p100
        %p210 = pneg %p124
        %p211 = pneg %p121
        %p212 = pneg %p150
        %p213 = pneg %p147
        %s214 = sand.u32 %s137, 1
        %s215 = scalar_lea.sflag [#allocation7], %s214
        %s216 = sand.u32 %s137, 1
        %s217 = smul.addr %s216, 16
        %s218 = scalar_lea.vmem [#allocation6], %s217
        %s219 = smul.u32 2, %s19
        %p220 = scmp.lt.s32.totalorder %s219, 3
        %s221 = scalar_select %p220, %s219, 3
        %s222 = smul.addr %s221, 8
        %s223 = scalar_lea.vmem %s0, %s222
        %s224 = smul.u32 2, %s19
        %s225 = smul.u32 2, %s19
        %v227 = vld [vmem:[%s223] sm:$0xff]
        %v228 = vld [vmem:[%s223 + $0x8] sm:$0xff]
        %v229 = vpack.c.bf16 %v228, %v227
        %v230 = vld [vmem:[%s1] sm:$0xff]
        %v231 = vld [vmem:[%s1 + $0x8] sm:$0xff]
        %v232 = vld [vmem:[%s1 + $0x10] sm:$0xff]
        %v233 = vld [vmem:[%s1 + $0x18] sm:$0xff]
        %v234 = vld [vmem:[%s1 + $0x20] sm:$0xff]
        %v235 = vld [vmem:[%s1 + $0x28] sm:$0xff]
        %v236 = vld [vmem:[%s1 + $0x30] sm:$0xff]
        %v237 = vld [vmem:[%s1 + $0x38] sm:$0xff]
        %v238 = vld [vmem:[%s2] sm:$0x3]
        %v240 = vperm.slane %v238, 0
        %v241 = vperm.slane %v238, 1
        %v252 = vunpack.c.l.b16 %v230
        %v253 = vunpack.c.h.b16 %v230
        %v254 = vunpack.c.l.b16 %v231
        %v255 = vunpack.c.h.b16 %v231
        %v256 = vunpack.c.l.b16 %v232
        %v257 = vunpack.c.h.b16 %v232
        %v258 = vunpack.c.l.b16 %v233
        %v259 = vunpack.c.h.b16 %v233
        %v260 = vunpack.c.l.b16 %v234
        %v261 = vunpack.c.h.b16 %v234
        %v262 = vunpack.c.l.b16 %v235
        %v263 = vunpack.c.h.b16 %v235
        %v264 = vunpack.c.l.b16 %v236
        %v265 = vunpack.c.h.b16 %v236
        %v266 = vunpack.c.l.b16 %v237
        %v267 = vunpack.c.h.b16 %v237
        %v268 = vpack.c.b16 %v254, %v252
        %v269 = vpack.c.b16 %v255, %v253
        %v270 = vpack.c.b16 %v258, %v256
        %v271 = vpack.c.b16 %v259, %v257
        %v272 = vpack.c.b16 %v262, %v260
        %v273 = vpack.c.b16 %v263, %v261
        %v274 = vpack.c.b16 %v266, %v264
        %v275 = vpack.c.b16 %v267, %v265
        %vm284 = vcmask 523264
        %v286 = vsel %vm284, %v229, 0
        %288 = vmatpush.bf16.msra.mxu0 0
        %289 = vmatpush.bf16.msra.mxu0 0
        %290 = vmatpush.bf16.msra.mxu0 0
        %291 = vmatpush.bf16.msra.mxu0 0
        %292 = vmatpush.bf16.msra.mxu0 %v274
        %293 = vmatpush.bf16.msra.mxu0 %v272
        %294 = vmatpush.bf16.msra.mxu0 %v270
        %295 = vmatpush.bf16.msra.mxu0 %v268
        %296 = vmatmul.bf16.gmra.mxu0 %v286
        %v297 = vpop.f32.mrf.mxu0
        %v298 = vadd.f32 %v240, %v297
        %v299 = vpop.f32.mrf.mxu0
        %v300 = vadd.f32 %v240, %v299
        %301 = vdwg.mxu0
        %302 = vmatpush.bf16.msra.mxu0 0
        %303 = vmatpush.bf16.msra.mxu0 0
        %304 = vmatpush.bf16.msra.mxu0 0
        %305 = vmatpush.bf16.msra.mxu0 0
        %306 = vmatpush.bf16.msra.mxu0 %v275
        %307 = vmatpush.bf16.msra.mxu0 %v273
        %308 = vmatpush.bf16.msra.mxu0 %v271
        %309 = vmatpush.bf16.msra.mxu0 %v269
        %310 = vmatmul.bf16.gmra.mxu0 %v286
        %v311 = vpop.f32.mrf.mxu0
        %v312 = vadd.f32 %v241, %v311
        %v313 = vpop.f32.mrf.mxu0
        %v314 = vadd.f32 %v241, %v313
        %315 = vdwg.mxu0
        %vm316 = vcmask 64512
        %317 = vst.msk [vmem:[#allocation2] sm:$0xff] %vm316, %v298
        %319 = vrot.lane.b32.xlu0 %v298, 64
        %v320 = vpop.permute.xlu0 %319
        %322 = vst.msk [vmem:[#allocation3] sm:$0xff] %vm316, %v320
        %323 = vst.msk [vmem:[#allocation4] sm:$0xff] %vm316, %v312
        %324 = vrot.lane.b32.xlu0 %v298, 120
        %v325 = vpop.permute.xlu0 %324
        %s327 = scalar_lea.vmem [#allocation2], 8
        %328 = vst.msk [vmem:[%s327] sm:$0xff] %vm316, %v325
        %329 = vrot.lane.b32.xlu0 %v298, 56
        %v330 = vpop.permute.xlu0 %329
        %s332 = scalar_lea.vmem [#allocation3], 8
        %333 = vst.msk [vmem:[%s332] sm:$0xff] %vm316, %v330
        %335 = vrot.lane.b32.xlu0 %v312, 120
        %v336 = vpop.permute.xlu0 %335
        %s338 = scalar_lea.vmem [#allocation4], 8
        %339 = vst.msk [vmem:[%s338] sm:$0xff] %vm316, %v336
        %340 = vrot.lane.b32.xlu0 %v298, 112
        %v341 = vpop.permute.xlu0 %340
        %s343 = scalar_lea.vmem [#allocation2], 16
        %344 = vst.msk [vmem:[%s343] sm:$0xff] %vm316, %v341
        %345 = vrot.lane.b32.xlu0 %v298, 48
        %v346 = vpop.permute.xlu0 %345
        %s348 = scalar_lea.vmem [#allocation3], 16
        %349 = vst.msk [vmem:[%s348] sm:$0xff] %vm316, %v346
        %350 = vrot.lane.b32.xlu0 %v312, 112
        %v351 = vpop.permute.xlu0 %350
        %s353 = scalar_lea.vmem [#allocation4], 16
        %354 = vst.msk [vmem:[%s353] sm:$0xff] %vm316, %v351
        %355 = vrot.lane.b32.xlu0 %v298, 104
        %v356 = vpop.permute.xlu0 %355
        %s358 = scalar_lea.vmem [#allocation2], 24
        %359 = vst.msk [vmem:[%s358] sm:$0xff] %vm316, %v356
        %360 = vrot.lane.b32.xlu0 %v298, 40
        %v361 = vpop.permute.xlu0 %360
        %s363 = scalar_lea.vmem [#allocation3], 24
        %364 = vst.msk [vmem:[%s363] sm:$0xff] %vm316, %v361
        %365 = vrot.lane.b32.xlu0 %v312, 104
        %v366 = vpop.permute.xlu0 %365
        %s368 = scalar_lea.vmem [#allocation4], 24
        %369 = vst.msk [vmem:[%s368] sm:$0xff] %vm316, %v366
        %370 = vrot.lane.b32.xlu0 %v298, 96
        %v371 = vpop.permute.xlu0 %370
        %s373 = scalar_lea.vmem [#allocation2], 32
        %374 = vst.msk [vmem:[%s373] sm:$0xff] %vm316, %v371
        %375 = vrot.lane.b32.xlu0 %v298, 32
        %v376 = vpop.permute.xlu0 %375
        %s378 = scalar_lea.vmem [#allocation3], 32
        %379 = vst.msk [vmem:[%s378] sm:$0xff] %vm316, %v376
        %380 = vrot.lane.b32.xlu0 %v312, 96
        %v381 = vpop.permute.xlu0 %380
        %s383 = scalar_lea.vmem [#allocation4], 32
        %384 = vst.msk [vmem:[%s383] sm:$0xff] %vm316, %v381
        %385 = vrot.lane.b32.xlu0 %v298, 88
        %v386 = vpop.permute.xlu0 %385
        %s388 = scalar_lea.vmem [#allocation2], 40
        %389 = vst.msk [vmem:[%s388] sm:$0xff] %vm316, %v386
        %390 = vrot.lane.b32.xlu0 %v298, 24
        %v391 = vpop.permute.xlu0 %390
        %s393 = scalar_lea.vmem [#allocation3], 40
        %394 = vst.msk [vmem:[%s393] sm:$0xff] %vm316, %v391
        %395 = vrot.lane.b32.xlu0 %v312, 88
        %v396 = vpop.permute.xlu0 %395
        %s398 = scalar_lea.vmem [#allocation4], 40
        %399 = vst.msk [vmem:[%s398] sm:$0xff] %vm316, %v396
        %400 = vrot.lane.b32.xlu0 %v298, 80
        %v401 = vpop.permute.xlu0 %400
        %s403 = scalar_lea.vmem [#allocation2], 48
        %404 = vst.msk [vmem:[%s403] sm:$0xff] %vm316, %v401
        %405 = vrot.lane.b32.xlu0 %v298, 16
        %v406 = vpop.permute.xlu0 %405
        %s408 = scalar_lea.vmem [#allocation3], 48
        %409 = vst.msk [vmem:[%s408] sm:$0xff] %vm316, %v406
        %410 = vrot.lane.b32.xlu0 %v312, 80
        %v411 = vpop.permute.xlu0 %410
        %s413 = scalar_lea.vmem [#allocation4], 48
        %414 = vst.msk [vmem:[%s413] sm:$0xff] %vm316, %v411
        %415 = vrot.lane.b32.xlu0 %v298, 72
        %v416 = vpop.permute.xlu0 %415
        %s418 = scalar_lea.vmem [#allocation2], 56
        %419 = vst.msk [vmem:[%s418] sm:$0xff] %vm316, %v416
        %420 = vrot.lane.b32.xlu0 %v298, 8
        %v421 = vpop.permute.xlu0 %420
        %s423 = scalar_lea.vmem [#allocation3], 56
        %424 = vst.msk [vmem:[%s423] sm:$0xff] %vm316, %v421
        %425 = vrot.lane.b32.xlu0 %v312, 72
        %v426 = vpop.permute.xlu0 %425
        %s428 = scalar_lea.vmem [#allocation4], 56
        %429 = vst.msk [vmem:[%s428] sm:$0xff] %vm316, %v426
        %s430 = scalar_lea.vmem [#allocation2], 64
        %431 = vst.msk [vmem:[%s430] sm:$0xff] %vm316, %v300
        %433 = vrot.lane.b32.xlu0 %v300, 64
        %v434 = vpop.permute.xlu0 %433
        %s436 = scalar_lea.vmem [#allocation3], 64
        %437 = vst.msk [vmem:[%s436] sm:$0xff] %vm316, %v434
        %s438 = scalar_lea.vmem [#allocation4], 64
        %439 = vst.msk [vmem:[%s438] sm:$0xff] %vm316, %v314
        %440 = vrot.lane.b32.xlu0 %v300, 120
        %v441 = vpop.permute.xlu0 %440
        %s443 = scalar_lea.vmem [#allocation2], 72
        %444 = vst.msk [vmem:[%s443] sm:$0xff] %vm316, %v441
        %445 = vrot.lane.b32.xlu0 %v300, 56
        %v446 = vpop.permute.xlu0 %445
        %s448 = scalar_lea.vmem [#allocation3], 72
        %449 = vst.msk [vmem:[%s448] sm:$0xff] %vm316, %v446
        %451 = vrot.lane.b32.xlu0 %v314, 120
        %v452 = vpop.permute.xlu0 %451
        %s454 = scalar_lea.vmem [#allocation4], 72
        %455 = vst.msk [vmem:[%s454] sm:$0xff] %vm316, %v452
        %456 = vrot.lane.b32.xlu0 %v300, 112
        %v457 = vpop.permute.xlu0 %456
        %s459 = scalar_lea.vmem [#allocation2], 80
        %460 = vst.msk [vmem:[%s459] sm:$0xff] %vm316, %v457
        %461 = vrot.lane.b32.xlu0 %v300, 48
        %v462 = vpop.permute.xlu0 %461
        %s464 = scalar_lea.vmem [#allocation3], 80
        %465 = vst.msk [vmem:[%s464] sm:$0xff] %vm316, %v462
        %466 = vrot.lane.b32.xlu0 %v314, 112
        %v467 = vpop.permute.xlu0 %466
        %s469 = scalar_lea.vmem [#allocation4], 80
        %470 = vst.msk [vmem:[%s469] sm:$0xff] %vm316, %v467
        %471 = vrot.lane.b32.xlu0 %v300, 104
        %v472 = vpop.permute.xlu0 %471
        %s474 = scalar_lea.vmem [#allocation2], 88
        %475 = vst.msk [vmem:[%s474] sm:$0xff] %vm316, %v472
        %476 = vrot.lane.b32.xlu0 %v300, 40
        %v477 = vpop.permute.xlu0 %476
        %s479 = scalar_lea.vmem [#allocation3], 88
        %480 = vst.msk [vmem:[%s479] sm:$0xff] %vm316, %v477
        %481 = vrot.lane.b32.xlu0 %v314, 104
        %v482 = vpop.permute.xlu0 %481
        %s484 = scalar_lea.vmem [#allocation4], 88
        %485 = vst.msk [vmem:[%s484] sm:$0xff] %vm316, %v482
        %486 = vrot.lane.b32.xlu0 %v300, 96
        %v487 = vpop.permute.xlu0 %486
        %s489 = scalar_lea.vmem [#allocation2], 96
        %490 = vst.msk [vmem:[%s489] sm:$0xff] %vm316, %v487
        %491 = vrot.lane.b32.xlu0 %v300, 32
        %v492 = vpop.permute.xlu0 %491
        %s494 = scalar_lea.vmem [#allocation3], 96
        %495 = vst.msk [vmem:[%s494] sm:$0xff] %vm316, %v492
        %496 = vrot.lane.b32.xlu0 %v314, 96
        %v497 = vpop.permute.xlu0 %496
        %s499 = scalar_lea.vmem [#allocation4], 96
        %500 = vst.msk [vmem:[%s499] sm:$0xff] %vm316, %v497
        %501 = vrot.lane.b32.xlu0 %v300, 88
        %v502 = vpop.permute.xlu0 %501
        %s504 = scalar_lea.vmem [#allocation2], 104
        %505 = vst.msk [vmem:[%s504] sm:$0xff] %vm316, %v502
        %506 = vrot.lane.b32.xlu0 %v300, 24
        %v507 = vpop.permute.xlu0 %506
        %s509 = scalar_lea.vmem [#allocation3], 104
        %510 = vst.msk [vmem:[%s509] sm:$0xff] %vm316, %v507
        %511 = vrot.lane.b32.xlu0 %v314, 88
        %v512 = vpop.permute.xlu0 %511
        %s514 = scalar_lea.vmem [#allocation4], 104
        %515 = vst.msk [vmem:[%s514] sm:$0xff] %vm316, %v512
        %516 = vrot.lane.b32.xlu0 %v300, 80
        %v517 = vpop.permute.xlu0 %516
        %s519 = scalar_lea.vmem [#allocation2], 112
        %520 = vst.msk [vmem:[%s519] sm:$0xff] %vm316, %v517
        %521 = vrot.lane.b32.xlu0 %v300, 16
        %v522 = vpop.permute.xlu0 %521
        %s524 = scalar_lea.vmem [#allocation3], 112
        %525 = vst.msk [vmem:[%s524] sm:$0xff] %vm316, %v522
        %526 = vrot.lane.b32.xlu0 %v314, 80
        %v527 = vpop.permute.xlu0 %526
        %s529 = scalar_lea.vmem [#allocation4], 112
        %530 = vst.msk [vmem:[%s529] sm:$0xff] %vm316, %v527
        %531 = vrot.lane.b32.xlu0 %v300, 72
        %v532 = vpop.permute.xlu0 %531
        %s534 = scalar_lea.vmem [#allocation2], 120
        %535 = vst.msk [vmem:[%s534] sm:$0xff] %vm316, %v532
        %536 = vrot.lane.b32.xlu0 %v300, 8
        %v537 = vpop.permute.xlu0 %536
        %s539 = scalar_lea.vmem [#allocation3], 120
        %540 = vst.msk [vmem:[%s539] sm:$0xff] %vm316, %v537
        %541 = vrot.lane.b32.xlu0 %v314, 72
        %v542 = vpop.permute.xlu0 %541
        %s544 = scalar_lea.vmem [#allocation4], 120
        %545 = vst.msk [vmem:[%s544] sm:$0xff] %vm316, %v542
        %v546 = vld [vmem:[#allocation2] sm:$0xff]
        %v547 = vld [vmem:[#allocation2 + $0x8] sm:$0xff]
        %v548 = vld [vmem:[#allocation2 + $0x10] sm:$0xff]
        %v549 = vld [vmem:[#allocation2 + $0x18] sm:$0xff]
        %v550 = vld [vmem:[#allocation2 + $0x20] sm:$0xff]
        %v551 = vld [vmem:[#allocation2 + $0x28] sm:$0xff]
        %v552 = vld [vmem:[#allocation2 + $0x30] sm:$0xff]
        %v553 = vld [vmem:[#allocation2 + $0x38] sm:$0xff]
        %v554 = vld [vmem:[#allocation2 + $0x40] sm:$0xff]
        %v555 = vld [vmem:[#allocation2 + $0x48] sm:$0xff]
        %v556 = vld [vmem:[#allocation2 + $0x50] sm:$0xff]
        %v557 = vld [vmem:[#allocation2 + $0x58] sm:$0xff]
        %v558 = vld [vmem:[#allocation2 + $0x60] sm:$0xff]
        %v559 = vld [vmem:[#allocation2 + $0x68] sm:$0xff]
        %v560 = vld [vmem:[#allocation2 + $0x70] sm:$0xff]
        %v561 = vld [vmem:[#allocation2 + $0x78] sm:$0xff]
        %v562 = vpack.c.bf16 %v546, %v546
        %v563 = vpack.c.bf16 %v547, %v547
        %v564 = vpack.c.bf16 %v548, %v548
        %v565 = vpack.c.bf16 %v549, %v549
        %v566 = vpack.c.bf16 %v550, %v550
        %v567 = vpack.c.bf16 %v551, %v551
        %v568 = vpack.c.bf16 %v552, %v552
        %v569 = vpack.c.bf16 %v553, %v553
        %v570 = vpack.c.bf16 %v554, %v554
        %v571 = vpack.c.bf16 %v555, %v555
        %v572 = vpack.c.bf16 %v556, %v556
        %v573 = vpack.c.bf16 %v557, %v557
        %v574 = vpack.c.bf16 %v558, %v558
        %v575 = vpack.c.bf16 %v559, %v559
        %v576 = vpack.c.bf16 %v560, %v560
        %v577 = vpack.c.bf16 %v561, %v561
        %v578 = vld [vmem:[#allocation3] sm:$0xff]
        %v579 = vld [vmem:[#allocation3 + $0x8] sm:$0xff]
        %v580 = vld [vmem:[#allocation3 + $0x10] sm:$0xff]
        %v581 = vld [vmem:[#allocation3 + $0x18] sm:$0xff]
        %v582 = vld [vmem:[#allocation3 + $0x20] sm:$0xff]
        %v583 = vld [vmem:[#allocation3 + $0x28] sm:$0xff]
        %v584 = vld [vmem:[#allocation3 + $0x30] sm:$0xff]
        %v585 = vld [vmem:[#allocation3 + $0x38] sm:$0xff]
        %v586 = vld [vmem:[#allocation3 + $0x40] sm:$0xff]
        %v587 = vld [vmem:[#allocation3 + $0x48] sm:$0xff]
        %v588 = vld [vmem:[#allocation3 + $0x50] sm:$0xff]
        %v589 = vld [vmem:[#allocation3 + $0x58] sm:$0xff]
        %v590 = vld [vmem:[#allocation3 + $0x60] sm:$0xff]
        %v591 = vld [vmem:[#allocation3 + $0x68] sm:$0xff]
        %v592 = vld [vmem:[#allocation3 + $0x70] sm:$0xff]
        %v593 = vld [vmem:[#allocation3 + $0x78] sm:$0xff]
        %v594 = vpack.c.bf16 %v578, %v578
        %v595 = vpack.c.bf16 %v579, %v579
        %v596 = vpack.c.bf16 %v580, %v580
        %v597 = vpack.c.bf16 %v581, %v581
        %v598 = vpack.c.bf16 %v582, %v582
        %v599 = vpack.c.bf16 %v583, %v583
        %v600 = vpack.c.bf16 %v584, %v584
        %v601 = vpack.c.bf16 %v585, %v585
        %v602 = vpack.c.bf16 %v586, %v586
        %v603 = vpack.c.bf16 %v587, %v587
        %v604 = vpack.c.bf16 %v588, %v588
        %v605 = vpack.c.bf16 %v589, %v589
        %v606 = vpack.c.bf16 %v590, %v590
        %v607 = vpack.c.bf16 %v591, %v591
        %v608 = vpack.c.bf16 %v592, %v592
        %v609 = vpack.c.bf16 %v593, %v593
        %v610 = vld [vmem:[#allocation4] sm:$0xff]
        %v611 = vld [vmem:[#allocation4 + $0x8] sm:$0xff]
        %v612 = vld [vmem:[#allocation4 + $0x10] sm:$0xff]
        %v613 = vld [vmem:[#allocation4 + $0x18] sm:$0xff]
        %v614 = vld [vmem:[#allocation4 + $0x20] sm:$0xff]
        %v615 = vld [vmem:[#allocation4 + $0x28] sm:$0xff]
        %v616 = vld [vmem:[#allocation4 + $0x30] sm:$0xff]
        %v617 = vld [vmem:[#allocation4 + $0x38] sm:$0xff]
        %v618 = vld [vmem:[#allocation4 + $0x40] sm:$0xff]
        %v619 = vld [vmem:[#allocation4 + $0x48] sm:$0xff]
        %v620 = vld [vmem:[#allocation4 + $0x50] sm:$0xff]
        %v621 = vld [vmem:[#allocation4 + $0x58] sm:$0xff]
        %v622 = vld [vmem:[#allocation4 + $0x60] sm:$0xff]
        %v623 = vld [vmem:[#allocation4 + $0x68] sm:$0xff]
        %v624 = vld [vmem:[#allocation4 + $0x70] sm:$0xff]
        %v625 = vld [vmem:[#allocation4 + $0x78] sm:$0xff]
        %v626 = vpack.c.bf16 %v610, %v610
        %v627 = vpack.c.bf16 %v611, %v611
        %v628 = vpack.c.bf16 %v612, %v612
        %v629 = vpack.c.bf16 %v613, %v613
        %v630 = vpack.c.bf16 %v614, %v614
        %v631 = vpack.c.bf16 %v615, %v615
        %v632 = vpack.c.bf16 %v616, %v616
        %v633 = vpack.c.bf16 %v617, %v617
        %v634 = vpack.c.bf16 %v618, %v618
        %v635 = vpack.c.bf16 %v619, %v619
        %v636 = vpack.c.bf16 %v620, %v620
        %v637 = vpack.c.bf16 %v621, %v621
        %v638 = vpack.c.bf16 %v622, %v622
        %v639 = vpack.c.bf16 %v623, %v623
        %v640 = vpack.c.bf16 %v624, %v624
        %v641 = vpack.c.bf16 %v625, %v625
        %v643 = vsel %vm316, %v562, 0
        %v646 = vsel %vm316, %v594, 0
        %648 = vmatpush.bf16.xpose.msra.mxu0 0
        %649 = vmatpush.bf16.xpose.msra.mxu0 0
        %650 = vmatpush.bf16.xpose.msra.mxu0 0
        %651 = vmatpush.bf16.xpose.msra.mxu0 0
        %652 = vmatpush.bf16.xpose.msra.mxu0 0
        %653 = vmatpush.bf16.xpose.msra.mxu0 0
        %654 = vmatpush.bf16.xpose.msra.mxu0 0
        %655 = vmatpush.bf16.xpose.msra.mxu0 %v646
        %656 = vmatmul.bf16.gmra.mxu0 %v643
        %v657 = vpop.f32.mrf.mxu0
        %v658 = vadd.f32 0.0, %v657
        %v659 = vpop.f32.mrf.mxu0
        %660 = vdwg.mxu0
        %v662 = vsel %vm316, %v563, 0
        %v665 = vsel %vm316, %v595, 0
        %667 = vmatpush.bf16.xpose.msra.mxu0 0
        %668 = vmatpush.bf16.xpose.msra.mxu0 0
        %669 = vmatpush.bf16.xpose.msra.mxu0 0
        %670 = vmatpush.bf16.xpose.msra.mxu0 0
        %671 = vmatpush.bf16.xpose.msra.mxu0 0
        %672 = vmatpush.bf16.xpose.msra.mxu0 0
        %673 = vmatpush.bf16.xpose.msra.mxu0 0
        %674 = vmatpush.bf16.xpose.msra.mxu0 %v665
        %675 = vmatmul.bf16.gmra.mxu0 %v662
        %v676 = vpop.f32.mrf.mxu0
        %v677 = vadd.f32 0.0, %v676
        %v678 = vpop.f32.mrf.mxu0
        %679 = vdwg.mxu0
        %v681 = vsel %vm316, %v564, 0
        %v684 = vsel %vm316, %v596, 0
        %686 = vmatpush.bf16.xpose.msra.mxu0 0
        %687 = vmatpush.bf16.xpose.msra.mxu0 0
        %688 = vmatpush.bf16.xpose.msra.mxu0 0
        %689 = vmatpush.bf16.xpose.msra.mxu0 0
        %690 = vmatpush.bf16.xpose.msra.mxu0 0
        %691 = vmatpush.bf16.xpose.msra.mxu0 0
        %692 = vmatpush.bf16.xpose.msra.mxu0 0
        %693 = vmatpush.bf16.xpose.msra.mxu0 %v684
        %694 = vmatmul.bf16.gmra.mxu0 %v681
        %v695 = vpop.f32.mrf.mxu0
        %v696 = vadd.f32 0.0, %v695
        %v697 = vpop.f32.mrf.mxu0
        %698 = vdwg.mxu0
        %v700 = vsel %vm316, %v565, 0
        %v703 = vsel %vm316, %v597, 0
        %705 = vmatpush.bf16.xpose.msra.mxu0 0
        %706 = vmatpush.bf16.xpose.msra.mxu0 0
        %707 = vmatpush.bf16.xpose.msra.mxu0 0
        %708 = vmatpush.bf16.xpose.msra.mxu0 0
        %709 = vmatpush.bf16.xpose.msra.mxu0 0
        %710 = vmatpush.bf16.xpose.msra.mxu0 0
        %711 = vmatpush.bf16.xpose.msra.mxu0 0
        %712 = vmatpush.bf16.xpose.msra.mxu0 %v703
        %713 = vmatmul.bf16.gmra.mxu0 %v700
        %v714 = vpop.f32.mrf.mxu0
        %v715 = vadd.f32 0.0, %v714
        %v716 = vpop.f32.mrf.mxu0
        %717 = vdwg.mxu0
        %v719 = vsel %vm316, %v566, 0
        %v722 = vsel %vm316, %v598, 0
        %724 = vmatpush.bf16.xpose.msra.mxu0 0
        %725 = vmatpush.bf16.xpose.msra.mxu0 0
        %726 = vmatpush.bf16.xpose.msra.mxu0 0
        %727 = vmatpush.bf16.xpose.msra.mxu0 0
        %728 = vmatpush.bf16.xpose.msra.mxu0 0
        %729 = vmatpush.bf16.xpose.msra.mxu0 0
        %730 = vmatpush.bf16.xpose.msra.mxu0 0
        %731 = vmatpush.bf16.xpose.msra.mxu0 %v722
        %732 = vmatmul.bf16.gmra.mxu0 %v719
        %v733 = vpop.f32.mrf.mxu0
        %v734 = vadd.f32 0.0, %v733
        %v735 = vpop.f32.mrf.mxu0
        %736 = vdwg.mxu0
        %v738 = vsel %vm316, %v567, 0
        %v741 = vsel %vm316, %v599, 0
        %743 = vmatpush.bf16.xpose.msra.mxu0 0
        %744 = vmatpush.bf16.xpose.msra.mxu0 0
        %745 = vmatpush.bf16.xpose.msra.mxu0 0
        %746 = vmatpush.bf16.xpose.msra.mxu0 0
        %747 = vmatpush.bf16.xpose.msra.mxu0 0
        %748 = vmatpush.bf16.xpose.msra.mxu0 0
        %749 = vmatpush.bf16.xpose.msra.mxu0 0
        %750 = vmatpush.bf16.xpose.msra.mxu0 %v741
        %751 = vmatmul.bf16.gmra.mxu0 %v738
        %v752 = vpop.f32.mrf.mxu0
        %v753 = vadd.f32 0.0, %v752
        %v754 = vpop.f32.mrf.mxu0
        %755 = vdwg.mxu0
        %v757 = vsel %vm316, %v568, 0
        %v760 = vsel %vm316, %v600, 0
        %762 = vmatpush.bf16.xpose.msra.mxu0 0
        %763 = vmatpush.bf16.xpose.msra.mxu0 0
        %764 = vmatpush.bf16.xpose.msra.mxu0 0
        %765 = vmatpush.bf16.xpose.msra.mxu0 0
        %766 = vmatpush.bf16.xpose.msra.mxu0 0
        %767 = vmatpush.bf16.xpose.msra.mxu0 0
        %768 = vmatpush.bf16.xpose.msra.mxu0 0
        %769 = vmatpush.bf16.xpose.msra.mxu0 %v760
        %770 = vmatmul.bf16.gmra.mxu0 %v757
        %v771 = vpop.f32.mrf.mxu0
        %v772 = vadd.f32 0.0, %v771
        %v773 = vpop.f32.mrf.mxu0
        %774 = vdwg.mxu0
        %v776 = vsel %vm316, %v569, 0
        %v779 = vsel %vm316, %v601, 0
        %781 = vmatpush.bf16.xpose.msra.mxu0 0
        %782 = vmatpush.bf16.xpose.msra.mxu0 0
        %783 = vmatpush.bf16.xpose.msra.mxu0 0
        %784 = vmatpush.bf16.xpose.msra.mxu0 0
        %785 = vmatpush.bf16.xpose.msra.mxu0 0
        %786 = vmatpush.bf16.xpose.msra.mxu0 0
        %787 = vmatpush.bf16.xpose.msra.mxu0 0
        %788 = vmatpush.bf16.xpose.msra.mxu0 %v779
        %789 = vmatmul.bf16.gmra.mxu0 %v776
        %v790 = vpop.f32.mrf.mxu0
        %v791 = vadd.f32 0.0, %v790
        %v792 = vpop.f32.mrf.mxu0
        %793 = vdwg.mxu0
        %v795 = vsel %vm316, %v570, 0
        %v798 = vsel %vm316, %v602, 0
        %800 = vmatpush.bf16.xpose.msra.mxu0 0
        %801 = vmatpush.bf16.xpose.msra.mxu0 0
        %802 = vmatpush.bf16.xpose.msra.mxu0 0
        %803 = vmatpush.bf16.xpose.msra.mxu0 0
        %804 = vmatpush.bf16.xpose.msra.mxu0 0
        %805 = vmatpush.bf16.xpose.msra.mxu0 0
        %806 = vmatpush.bf16.xpose.msra.mxu0 0
        %807 = vmatpush.bf16.xpose.msra.mxu0 %v798
        %808 = vmatmul.bf16.gmra.mxu0 %v795
        %v809 = vpop.f32.mrf.mxu0
        %v810 = vadd.f32 0.0, %v809
        %v811 = vpop.f32.mrf.mxu0
        %812 = vdwg.mxu0
        %v814 = vsel %vm316, %v571, 0
        %v817 = vsel %vm316, %v603, 0
        %819 = vmatpush.bf16.xpose.msra.mxu0 0
        %820 = vmatpush.bf16.xpose.msra.mxu0 0
        %821 = vmatpush.bf16.xpose.msra.mxu0 0
        %822 = vmatpush.bf16.xpose.msra.mxu0 0
        %823 = vmatpush.bf16.xpose.msra.mxu0 0
        %824 = vmatpush.bf16.xpose.msra.mxu0 0
        %825 = vmatpush.bf16.xpose.msra.mxu0 0
        %826 = vmatpush.bf16.xpose.msra.mxu0 %v817
        %827 = vmatmul.bf16.gmra.mxu0 %v814
        %v828 = vpop.f32.mrf.mxu0
        %v829 = vadd.f32 0.0, %v828
        %v830 = vpop.f32.mrf.mxu0
        %831 = vdwg.mxu0
        %v833 = vsel %vm316, %v572, 0
        %v836 = vsel %vm316, %v604, 0
        %838 = vmatpush.bf16.xpose.msra.mxu0 0
        %839 = vmatpush.bf16.xpose.msra.mxu0 0
        %840 = vmatpush.bf16.xpose.msra.mxu0 0
        %841 = vmatpush.bf16.xpose.msra.mxu0 0
        %842 = vmatpush.bf16.xpose.msra.mxu0 0
        %843 = vmatpush.bf16.xpose.msra.mxu0 0
        %844 = vmatpush.bf16.xpose.msra.mxu0 0
        %845 = vmatpush.bf16.xpose.msra.mxu0 %v836
        %846 = vmatmul.bf16.gmra.mxu0 %v833
        %v847 = vpop.f32.mrf.mxu0
        %v848 = vadd.f32 0.0, %v847
        %v849 = vpop.f32.mrf.mxu0
        %850 = vdwg.mxu0
        %v852 = vsel %vm316, %v573, 0
        %v855 = vsel %vm316, %v605, 0
        %857 = vmatpush.bf16.xpose.msra.mxu0 0
        %858 = vmatpush.bf16.xpose.msra.mxu0 0
        %859 = vmatpush.bf16.xpose.msra.mxu0 0
        %860 = vmatpush.bf16.xpose.msra.mxu0 0
        %861 = vmatpush.bf16.xpose.msra.mxu0 0
        %862 = vmatpush.bf16.xpose.msra.mxu0 0
        %863 = vmatpush.bf16.xpose.msra.mxu0 0
        %864 = vmatpush.bf16.xpose.msra.mxu0 %v855
        %865 = vmatmul.bf16.gmra.mxu0 %v852
        %v866 = vpop.f32.mrf.mxu0
        %v867 = vadd.f32 0.0, %v866
        %v868 = vpop.f32.mrf.mxu0
        %869 = vdwg.mxu0
        %v871 = vsel %vm316, %v574, 0
        %v874 = vsel %vm316, %v606, 0
        %876 = vmatpush.bf16.xpose.msra.mxu0 0
        %877 = vmatpush.bf16.xpose.msra.mxu0 0
        %878 = vmatpush.bf16.xpose.msra.mxu0 0
        %879 = vmatpush.bf16.xpose.msra.mxu0 0
        %880 = vmatpush.bf16.xpose.msra.mxu0 0
        %881 = vmatpush.bf16.xpose.msra.mxu0 0
        %882 = vmatpush.bf16.xpose.msra.mxu0 0
        %883 = vmatpush.bf16.xpose.msra.mxu0 %v874
        %884 = vmatmul.bf16.gmra.mxu0 %v871
        %v885 = vpop.f32.mrf.mxu0
        %v886 = vadd.f32 0.0, %v885
        %v887 = vpop.f32.mrf.mxu0
        %888 = vdwg.mxu0
        %v890 = vsel %vm316, %v575, 0
        %v893 = vsel %vm316, %v607, 0
        %895 = vmatpush.bf16.xpose.msra.mxu0 0
        %896 = vmatpush.bf16.xpose.msra.mxu0 0
        %897 = vmatpush.bf16.xpose.msra.mxu0 0
        %898 = vmatpush.bf16.xpose.msra.mxu0 0
        %899 = vmatpush.bf16.xpose.msra.mxu0 0
        %900 = vmatpush.bf16.xpose.msra.mxu0 0
        %901 = vmatpush.bf16.xpose.msra.mxu0 0
        %902 = vmatpush.bf16.xpose.msra.mxu0 %v893
        %903 = vmatmul.bf16.gmra.mxu0 %v890
        %v904 = vpop.f32.mrf.mxu0
        %v905 = vadd.f32 0.0, %v904
        %v906 = vpop.f32.mrf.mxu0
        %907 = vdwg.mxu0
        %v909 = vsel %vm316, %v576, 0
        %v912 = vsel %vm316, %v608, 0
        %914 = vmatpush.bf16.xpose.msra.mxu0 0
        %915 = vmatpush.bf16.xpose.msra.mxu0 0
        %916 = vmatpush.bf16.xpose.msra.mxu0 0
        %917 = vmatpush.bf16.xpose.msra.mxu0 0
        %918 = vmatpush.bf16.xpose.msra.mxu0 0
        %919 = vmatpush.bf16.xpose.msra.mxu0 0
        %920 = vmatpush.bf16.xpose.msra.mxu0 0
        %921 = vmatpush.bf16.xpose.msra.mxu0 %v912
        %922 = vmatmul.bf16.gmra.mxu0 %v909
        %v923 = vpop.f32.mrf.mxu0
        %v924 = vadd.f32 0.0, %v923
        %v925 = vpop.f32.mrf.mxu0
        %926 = vdwg.mxu0
        %v928 = vsel %vm316, %v577, 0
        %v931 = vsel %vm316, %v609, 0
        %933 = vmatpush.bf16.xpose.msra.mxu0 0
        %934 = vmatpush.bf16.xpose.msra.mxu0 0
        %935 = vmatpush.bf16.xpose.msra.mxu0 0
        %936 = vmatpush.bf16.xpose.msra.mxu0 0
        %937 = vmatpush.bf16.xpose.msra.mxu0 0
        %938 = vmatpush.bf16.xpose.msra.mxu0 0
        %939 = vmatpush.bf16.xpose.msra.mxu0 0
        %940 = vmatpush.bf16.xpose.msra.mxu0 %v931
        %941 = vmatmul.bf16.gmra.mxu0 %v928
        %v942 = vpop.f32.mrf.mxu0
        %v943 = vadd.f32 0.0, %v942
        %v944 = vpop.f32.mrf.mxu0
        %945 = vdwg.mxu0
        %v946 = vsel %vm316, %v658, -inf
        %947 = vmax.xlane.f32.xlu0 %v946
        %v948 = vpop.xlane.xlu0 %947
        %v949 = vsel %vm316, %v677, -inf
        %950 = vmax.xlane.f32.xlu0 %v949
        %v951 = vpop.xlane.xlu0 %950
        %v952 = vsel %vm316, %v696, -inf
        %953 = vmax.xlane.f32.xlu0 %v952
        %v954 = vpop.xlane.xlu0 %953
        %v955 = vsel %vm316, %v715, -inf
        %956 = vmax.xlane.f32.xlu0 %v955
        %v957 = vpop.xlane.xlu0 %956
        %v958 = vsel %vm316, %v734, -inf
        %959 = vmax.xlane.f32.xlu0 %v958
        %v960 = vpop.xlane.xlu0 %959
        %v961 = vsel %vm316, %v753, -inf
        %962 = vmax.xlane.f32.xlu0 %v961
        %v963 = vpop.xlane.xlu0 %962
        %v964 = vsel %vm316, %v772, -inf
        %965 = vmax.xlane.f32.xlu0 %v964
        %v966 = vpop.xlane.xlu0 %965
        %v967 = vsel %vm316, %v791, -inf
        %968 = vmax.xlane.f32.xlu0 %v967
        %v969 = vpop.xlane.xlu0 %968
        %v970 = vsel %vm316, %v810, -inf
        %971 = vmax.xlane.f32.xlu0 %v970
        %v972 = vpop.xlane.xlu0 %971
        %v973 = vsel %vm316, %v829, -inf
        %974 = vmax.xlane.f32.xlu0 %v973
        %v975 = vpop.xlane.xlu0 %974
        %v976 = vsel %vm316, %v848, -inf
        %977 = vmax.xlane.f32.xlu0 %v976
        %v978 = vpop.xlane.xlu0 %977
        %v979 = vsel %vm316, %v867, -inf
        %980 = vmax.xlane.f32.xlu0 %v979
        %v981 = vpop.xlane.xlu0 %980
        %v982 = vsel %vm316, %v886, -inf
        %983 = vmax.xlane.f32.xlu0 %v982
        %v984 = vpop.xlane.xlu0 %983
        %v985 = vsel %vm316, %v905, -inf
        %986 = vmax.xlane.f32.xlu0 %v985
        %v987 = vpop.xlane.xlu0 %986
        %v988 = vsel %vm316, %v924, -inf
        %989 = vmax.xlane.f32.xlu0 %v988
        %v990 = vpop.xlane.xlu0 %989
        %v991 = vsel %vm316, %v943, -inf
        %992 = vmax.xlane.f32.xlu0 %v991
        %v993 = vpop.xlane.xlu0 %992
        %v994 = vsub.f32 %v658, %v948
        %v995 = vsub.f32 %v677, %v951
        %v996 = vsub.f32 %v696, %v954
        %v997 = vsub.f32 %v715, %v957
        %v998 = vsub.f32 %v734, %v960
        %v999 = vsub.f32 %v753, %v963
        %v1000 = vsub.f32 %v772, %v966
        %v1001 = vsub.f32 %v791, %v969
        %v1002 = vsub.f32 %v810, %v972
        %v1003 = vsub.f32 %v829, %v975
        %v1004 = vsub.f32 %v848, %v978
        %v1005 = vsub.f32 %v867, %v981
        %v1006 = vsub.f32 %v886, %v984
        %v1007 = vsub.f32 %v905, %v987
        %v1008 = vsub.f32 %v924, %v990
        %v1009 = vsub.f32 %v943, %v993
        %v1010 = vmul.f32 %v994, 1.442695
        %v1011 = vpow.pop %v1010
        %v1012 = vmul.f32 %v995, 1.442695
        %v1013 = vpow.pop %v1012
        %v1014 = vmul.f32 %v996, 1.442695
        %v1015 = vpow.pop %v1014
        %v1016 = vmul.f32 %v997, 1.442695
        %v1017 = vpow.pop %v1016
        %v1018 = vmul.f32 %v998, 1.442695
        %v1019 = vpow.pop %v1018
        %v1020 = vmul.f32 %v999, 1.442695
        %v1021 = vpow.pop %v1020
        %v1022 = vmul.f32 %v1000, 1.442695
        %v1023 = vpow.pop %v1022
        %v1024 = vmul.f32 %v1001, 1.442695
        %v1025 = vpow.pop %v1024
        %v1026 = vmul.f32 %v1002, 1.442695
        %v1027 = vpow.pop %v1026
        %v1028 = vmul.f32 %v1003, 1.442695
        %v1029 = vpow.pop %v1028
        %v1030 = vmul.f32 %v1004, 1.442695
        %v1031 = vpow.pop %v1030
        %v1032 = vmul.f32 %v1005, 1.442695
        %v1033 = vpow.pop %v1032
        %v1034 = vmul.f32 %v1006, 1.442695
        %v1035 = vpow.pop %v1034
        %v1036 = vmul.f32 %v1007, 1.442695
        %v1037 = vpow.pop %v1036
        %v1038 = vmul.f32 %v1008, 1.442695
        %v1039 = vpow.pop %v1038
        %v1040 = vmul.f32 %v1009, 1.442695
        %v1041 = vpow.pop %v1040
        %v1042 = vsel %vm316, %v1011, 0.0
        %1043 = vadd.xlane.f32.xlu0 %v1042
        %v1044 = vpop.xlane.xlu0 %1043
        %v1045 = vsel %vm316, %v1013, 0.0
        %1046 = vadd.xlane.f32.xlu0 %v1045
        %v1047 = vpop.xlane.xlu0 %1046
        %v1048 = vsel %vm316, %v1015, 0.0
        %1049 = vadd.xlane.f32.xlu0 %v1048
        %v1050 = vpop.xlane.xlu0 %1049
        %v1051 = vsel %vm316, %v1017, 0.0
        %1052 = vadd.xlane.f32.xlu0 %v1051
        %v1053 = vpop.xlane.xlu0 %1052
        %v1054 = vsel %vm316, %v1019, 0.0
        %1055 = vadd.xlane.f32.xlu0 %v1054
        %v1056 = vpop.xlane.xlu0 %1055
        %v1057 = vsel %vm316, %v1021, 0.0
        %1058 = vadd.xlane.f32.xlu0 %v1057
        %v1059 = vpop.xlane.xlu0 %1058
        %v1060 = vsel %vm316, %v1023, 0.0
        %1061 = vadd.xlane.f32.xlu0 %v1060
        %v1062 = vpop.xlane.xlu0 %1061
        %v1063 = vsel %vm316, %v1025, 0.0
        %1064 = vadd.xlane.f32.xlu0 %v1063
        %v1065 = vpop.xlane.xlu0 %1064
        %v1066 = vsel %vm316, %v1027, 0.0
        %1067 = vadd.xlane.f32.xlu0 %v1066
        %v1068 = vpop.xlane.xlu0 %1067
        %v1069 = vsel %vm316, %v1029, 0.0
        %1070 = vadd.xlane.f32.xlu0 %v1069
        %v1071 = vpop.xlane.xlu0 %1070
        %v1072 = vsel %vm316, %v1031, 0.0
        %1073 = vadd.xlane.f32.xlu0 %v1072
        %v1074 = vpop.xlane.xlu0 %1073
        %v1075 = vsel %vm316, %v1033, 0.0
        %1076 = vadd.xlane.f32.xlu0 %v1075
        %v1077 = vpop.xlane.xlu0 %1076
        %v1078 = vsel %vm316, %v1035, 0.0
        %1079 = vadd.xlane.f32.xlu0 %v1078
        %v1080 = vpop.xlane.xlu0 %1079
        %v1081 = vsel %vm316, %v1037, 0.0
        %1082 = vadd.xlane.f32.xlu0 %v1081
        %v1083 = vpop.xlane.xlu0 %1082
        %v1084 = vsel %vm316, %v1039, 0.0
        %1085 = vadd.xlane.f32.xlu0 %v1084
        %v1086 = vpop.xlane.xlu0 %1085
        %v1087 = vsel %vm316, %v1041, 0.0
        %1088 = vadd.xlane.f32.xlu0 %v1087
        %v1089 = vpop.xlane.xlu0 %1088
        %v1090 = vrcp.pop %v1044
        %v1091 = vrcp.pop %v1047
        %v1092 = vrcp.pop %v1050
        %v1093 = vrcp.pop %v1053
        %v1094 = vrcp.pop %v1056
        %v1095 = vrcp.pop %v1059
        %v1096 = vrcp.pop %v1062
        %v1097 = vrcp.pop %v1065
        %v1098 = vrcp.pop %v1068
        %v1099 = vrcp.pop %v1071
        %v1100 = vrcp.pop %v1074
        %v1101 = vrcp.pop %v1077
        %v1102 = vrcp.pop %v1080
        %v1103 = vrcp.pop %v1083
        %v1104 = vrcp.pop %v1086
        %v1105 = vrcp.pop %v1089
        %v1106 = vmul.f32 %v1011, %v1090
        %v1107 = vmul.f32 %v1013, %v1091
        %v1108 = vmul.f32 %v1015, %v1092
        %v1109 = vmul.f32 %v1017, %v1093
        %v1110 = vmul.f32 %v1019, %v1094
        %v1111 = vmul.f32 %v1021, %v1095
        %v1112 = vmul.f32 %v1023, %v1096
        %v1113 = vmul.f32 %v1025, %v1097
        %v1114 = vmul.f32 %v1027, %v1098
        %v1115 = vmul.f32 %v1029, %v1099
        %v1116 = vmul.f32 %v1031, %v1100
        %v1117 = vmul.f32 %v1033, %v1101
        %v1118 = vmul.f32 %v1035, %v1102
        %v1119 = vmul.f32 %v1037, %v1103
        %v1120 = vmul.f32 %v1039, %v1104
        %v1121 = vmul.f32 %v1041, %v1105
        %v1122 = vpack.c.bf16 %v1106, %v1106
        %v1123 = vpack.c.bf16 %v1107, %v1107
        %v1124 = vpack.c.bf16 %v1108, %v1108
        %v1125 = vpack.c.bf16 %v1109, %v1109
        %v1126 = vpack.c.bf16 %v1110, %v1110
        %v1127 = vpack.c.bf16 %v1111, %v1111
        %v1128 = vpack.c.bf16 %v1112, %v1112
        %v1129 = vpack.c.bf16 %v1113, %v1113
        %v1130 = vpack.c.bf16 %v1114, %v1114
        %v1131 = vpack.c.bf16 %v1115, %v1115
        %v1132 = vpack.c.bf16 %v1116, %v1116
        %v1133 = vpack.c.bf16 %v1117, %v1117
        %v1134 = vpack.c.bf16 %v1118, %v1118
        %v1135 = vpack.c.bf16 %v1119, %v1119
        %v1136 = vpack.c.bf16 %v1120, %v1120
        %v1137 = vpack.c.bf16 %v1121, %v1121
        %v1139 = vsel %vm316, %v1122, 0
        %vm1141 = vcmask 1043456
        %v1143 = vsel %vm1141, %v626, 0
        %1145 = vmatpush.bf16.msra.mxu0 0
        %1146 = vmatpush.bf16.msra.mxu0 0
        %1147 = vmatpush.bf16.msra.mxu0 0
        %1148 = vmatpush.bf16.msra.mxu0 0
        %1149 = vmatpush.bf16.msra.mxu0 0
        %1150 = vmatpush.bf16.msra.mxu0 0
        %1151 = vmatpush.bf16.msra.mxu0 0
        %1152 = vmatpush.bf16.msra.mxu0 %v1143
        %1153 = vmatmul.bf16.gmra.mxu0 %v1139
        %v1154 = vpop.f32.mrf.mxu0
        %v1155 = vadd.f32 0.0, %v1154
        %v1156 = vpop.f32.mrf.mxu0
        %1157 = vdwg.mxu0
        %v1159 = vsel %vm316, %v1123, 0
        %v1162 = vsel %vm1141, %v627, 0
        %1164 = vmatpush.bf16.msra.mxu0 0
        %1165 = vmatpush.bf16.msra.mxu0 0
        %1166 = vmatpush.bf16.msra.mxu0 0
        %1167 = vmatpush.bf16.msra.mxu0 0
        %1168 = vmatpush.bf16.msra.mxu0 0
        %1169 = vmatpush.bf16.msra.mxu0 0
        %1170 = vmatpush.bf16.msra.mxu0 0
        %1171 = vmatpush.bf16.msra.mxu0 %v1162
        %1172 = vmatmul.bf16.gmra.mxu0 %v1159
        %v1173 = vpop.f32.mrf.mxu0
        %v1174 = vadd.f32 0.0, %v1173
        %v1175 = vpop.f32.mrf.mxu0
        %1176 = vdwg.mxu0
        %v1178 = vsel %vm316, %v1124, 0
        %v1181 = vsel %vm1141, %v628, 0
        %1183 = vmatpush.bf16.msra.mxu0 0
        %1184 = vmatpush.bf16.msra.mxu0 0
        %1185 = vmatpush.bf16.msra.mxu0 0
        %1186 = vmatpush.bf16.msra.mxu0 0
        %1187 = vmatpush.bf16.msra.mxu0 0
        %1188 = vmatpush.bf16.msra.mxu0 0
        %1189 = vmatpush.bf16.msra.mxu0 0
        %1190 = vmatpush.bf16.msra.mxu0 %v1181
        %1191 = vmatmul.bf16.gmra.mxu0 %v1178
        %v1192 = vpop.f32.mrf.mxu0
        %v1193 = vadd.f32 0.0, %v1192
        %v1194 = vpop.f32.mrf.mxu0
        %1195 = vdwg.mxu0
        %v1197 = vsel %vm316, %v1125, 0
        %v1200 = vsel %vm1141, %v629, 0
        %1202 = vmatpush.bf16.msra.mxu0 0
        %1203 = vmatpush.bf16.msra.mxu0 0
        %1204 = vmatpush.bf16.msra.mxu0 0
        %1205 = vmatpush.bf16.msra.mxu0 0
        %1206 = vmatpush.bf16.msra.mxu0 0
        %1207 = vmatpush.bf16.msra.mxu0 0
        %1208 = vmatpush.bf16.msra.mxu0 0
        %1209 = vmatpush.bf16.msra.mxu0 %v1200
        %1210 = vmatmul.bf16.gmra.mxu0 %v1197
        %v1211 = vpop.f32.mrf.mxu0
        %v1212 = vadd.f32 0.0, %v1211
        %v1213 = vpop.f32.mrf.mxu0
        %1214 = vdwg.mxu0
        %v1216 = vsel %vm316, %v1126, 0
        %v1219 = vsel %vm1141, %v630, 0
        %1221 = vmatpush.bf16.msra.mxu0 0
        %1222 = vmatpush.bf16.msra.mxu0 0
        %1223 = vmatpush.bf16.msra.mxu0 0
        %1224 = vmatpush.bf16.msra.mxu0 0
        %1225 = vmatpush.bf16.msra.mxu0 0
        %1226 = vmatpush.bf16.msra.mxu0 0
        %1227 = vmatpush.bf16.msra.mxu0 0
        %1228 = vmatpush.bf16.msra.mxu0 %v1219
        %1229 = vmatmul.bf16.gmra.mxu0 %v1216
        %v1230 = vpop.f32.mrf.mxu0
        %v1231 = vadd.f32 0.0, %v1230
        %v1232 = vpop.f32.mrf.mxu0
        %1233 = vdwg.mxu0
        %v1235 = vsel %vm316, %v1127, 0
        %v1238 = vsel %vm1141, %v631, 0
        %1240 = vmatpush.bf16.msra.mxu0 0
        %1241 = vmatpush.bf16.msra.mxu0 0
        %1242 = vmatpush.bf16.msra.mxu0 0
        %1243 = vmatpush.bf16.msra.mxu0 0
        %1244 = vmatpush.bf16.msra.mxu0 0
        %1245 = vmatpush.bf16.msra.mxu0 0
        %1246 = vmatpush.bf16.msra.mxu0 0
        %1247 = vmatpush.bf16.msra.mxu0 %v1238
        %1248 = vmatmul.bf16.gmra.mxu0 %v1235
        %v1249 = vpop.f32.mrf.mxu0
        %v1250 = vadd.f32 0.0, %v1249
        %v1251 = vpop.f32.mrf.mxu0
        %1252 = vdwg.mxu0
        %v1254 = vsel %vm316, %v1128, 0
        %v1257 = vsel %vm1141, %v632, 0
        %1259 = vmatpush.bf16.msra.mxu0 0
        %1260 = vmatpush.bf16.msra.mxu0 0
        %1261 = vmatpush.bf16.msra.mxu0 0
        %1262 = vmatpush.bf16.msra.mxu0 0
        %1263 = vmatpush.bf16.msra.mxu0 0
        %1264 = vmatpush.bf16.msra.mxu0 0
        %1265 = vmatpush.bf16.msra.mxu0 0
        %1266 = vmatpush.bf16.msra.mxu0 %v1257
        %1267 = vmatmul.bf16.gmra.mxu0 %v1254
        %v1268 = vpop.f32.mrf.mxu0
        %v1269 = vadd.f32 0.0, %v1268
        %v1270 = vpop.f32.mrf.mxu0
        %1271 = vdwg.mxu0
        %v1273 = vsel %vm316, %v1129, 0
        %v1276 = vsel %vm1141, %v633, 0
        %1278 = vmatpush.bf16.msra.mxu0 0
        %1279 = vmatpush.bf16.msra.mxu0 0
        %1280 = vmatpush.bf16.msra.mxu0 0
        %1281 = vmatpush.bf16.msra.mxu0 0
        %1282 = vmatpush.bf16.msra.mxu0 0
        %1283 = vmatpush.bf16.msra.mxu0 0
        %1284 = vmatpush.bf16.msra.mxu0 0
        %1285 = vmatpush.bf16.msra.mxu0 %v1276
        %1286 = vmatmul.bf16.gmra.mxu0 %v1273
        %v1287 = vpop.f32.mrf.mxu0
        %v1288 = vadd.f32 0.0, %v1287
        %v1289 = vpop.f32.mrf.mxu0
        %1290 = vdwg.mxu0
        %v1292 = vsel %vm316, %v1130, 0
        %v1295 = vsel %vm1141, %v634, 0
        %1297 = vmatpush.bf16.msra.mxu0 0
        %1298 = vmatpush.bf16.msra.mxu0 0
        %1299 = vmatpush.bf16.msra.mxu0 0
        %1300 = vmatpush.bf16.msra.mxu0 0
        %1301 = vmatpush.bf16.msra.mxu0 0
        %1302 = vmatpush.bf16.msra.mxu0 0
        %1303 = vmatpush.bf16.msra.mxu0 0
        %1304 = vmatpush.bf16.msra.mxu0 %v1295
        %1305 = vmatmul.bf16.gmra.mxu0 %v1292
        %v1306 = vpop.f32.mrf.mxu0
        %v1307 = vadd.f32 0.0, %v1306
        %v1308 = vpop.f32.mrf.mxu0
        %1309 = vdwg.mxu0
        %v1311 = vsel %vm316, %v1131, 0
        %v1314 = vsel %vm1141, %v635, 0
        %1316 = vmatpush.bf16.msra.mxu0 0
        %1317 = vmatpush.bf16.msra.mxu0 0
        %1318 = vmatpush.bf16.msra.mxu0 0
        %1319 = vmatpush.bf16.msra.mxu0 0
        %1320 = vmatpush.bf16.msra.mxu0 0
        %1321 = vmatpush.bf16.msra.mxu0 0
        %1322 = vmatpush.bf16.msra.mxu0 0
        %1323 = vmatpush.bf16.msra.mxu0 %v1314
        %1324 = vmatmul.bf16.gmra.mxu0 %v1311
        %v1325 = vpop.f32.mrf.mxu0
        %v1326 = vadd.f32 0.0, %v1325
        %v1327 = vpop.f32.mrf.mxu0
        %1328 = vdwg.mxu0
        %v1330 = vsel %vm316, %v1132, 0
        %v1333 = vsel %vm1141, %v636, 0
        %1335 = vmatpush.bf16.msra.mxu0 0
        %1336 = vmatpush.bf16.msra.mxu0 0
        %1337 = vmatpush.bf16.msra.mxu0 0
        %1338 = vmatpush.bf16.msra.mxu0 0
        %1339 = vmatpush.bf16.msra.mxu0 0
        %1340 = vmatpush.bf16.msra.mxu0 0
        %1341 = vmatpush.bf16.msra.mxu0 0
        %1342 = vmatpush.bf16.msra.mxu0 %v1333
        %1343 = vmatmul.bf16.gmra.mxu0 %v1330
        %v1344 = vpop.f32.mrf.mxu0
        %v1345 = vadd.f32 0.0, %v1344
        %v1346 = vpop.f32.mrf.mxu0
        %1347 = vdwg.mxu0
        %v1349 = vsel %vm316, %v1133, 0
        %v1352 = vsel %vm1141, %v637, 0
        %1354 = vmatpush.bf16.msra.mxu0 0
        %1355 = vmatpush.bf16.msra.mxu0 0
        %1356 = vmatpush.bf16.msra.mxu0 0
        %1357 = vmatpush.bf16.msra.mxu0 0
        %1358 = vmatpush.bf16.msra.mxu0 0
        %1359 = vmatpush.bf16.msra.mxu0 0
        %1360 = vmatpush.bf16.msra.mxu0 0
        %1361 = vmatpush.bf16.msra.mxu0 %v1352
        %1362 = vmatmul.bf16.gmra.mxu0 %v1349
        %v1363 = vpop.f32.mrf.mxu0
        %v1364 = vadd.f32 0.0, %v1363
        %v1365 = vpop.f32.mrf.mxu0
        %1366 = vdwg.mxu0
        %v1368 = vsel %vm316, %v1134, 0
        %v1371 = vsel %vm1141, %v638, 0
        %1373 = vmatpush.bf16.msra.mxu0 0
        %1374 = vmatpush.bf16.msra.mxu0 0
        %1375 = vmatpush.bf16.msra.mxu0 0
        %1376 = vmatpush.bf16.msra.mxu0 0
        %1377 = vmatpush.bf16.msra.mxu0 0
        %1378 = vmatpush.bf16.msra.mxu0 0
        %1379 = vmatpush.bf16.msra.mxu0 0
        %1380 = vmatpush.bf16.msra.mxu0 %v1371
        %1381 = vmatmul.bf16.gmra.mxu0 %v1368
        %v1382 = vpop.f32.mrf.mxu0
        %v1383 = vadd.f32 0.0, %v1382
        %v1384 = vpop.f32.mrf.mxu0
        %1385 = vdwg.mxu0
        %v1387 = vsel %vm316, %v1135, 0
        %v1390 = vsel %vm1141, %v639, 0
        %1392 = vmatpush.bf16.msra.mxu0 0
        %1393 = vmatpush.bf16.msra.mxu0 0
        %1394 = vmatpush.bf16.msra.mxu0 0
        %1395 = vmatpush.bf16.msra.mxu0 0
        %1396 = vmatpush.bf16.msra.mxu0 0
        %1397 = vmatpush.bf16.msra.mxu0 0
        %1398 = vmatpush.bf16.msra.mxu0 0
        %1399 = vmatpush.bf16.msra.mxu0 %v1390
        %1400 = vmatmul.bf16.gmra.mxu0 %v1387
        %v1401 = vpop.f32.mrf.mxu0
        %v1402 = vadd.f32 0.0, %v1401
        %v1403 = vpop.f32.mrf.mxu0
        %1404 = vdwg.mxu0
        %v1406 = vsel %vm316, %v1136, 0
        %v1409 = vsel %vm1141, %v640, 0
        %1411 = vmatpush.bf16.msra.mxu0 0
        %1412 = vmatpush.bf16.msra.mxu0 0
        %1413 = vmatpush.bf16.msra.mxu0 0
        %1414 = vmatpush.bf16.msra.mxu0 0
        %1415 = vmatpush.bf16.msra.mxu0 0
        %1416 = vmatpush.bf16.msra.mxu0 0
        %1417 = vmatpush.bf16.msra.mxu0 0
        %1418 = vmatpush.bf16.msra.mxu0 %v1409
        %1419 = vmatmul.bf16.gmra.mxu0 %v1406
        %v1420 = vpop.f32.mrf.mxu0
        %v1421 = vadd.f32 0.0, %v1420
        %v1422 = vpop.f32.mrf.mxu0
        %1423 = vdwg.mxu0
        %v1425 = vsel %vm316, %v1137, 0
        %v1428 = vsel %vm1141, %v641, 0
        %1430 = vmatpush.bf16.msra.mxu0 0
        %1431 = vmatpush.bf16.msra.mxu0 0
        %1432 = vmatpush.bf16.msra.mxu0 0
        %1433 = vmatpush.bf16.msra.mxu0 0
        %1434 = vmatpush.bf16.msra.mxu0 0
        %1435 = vmatpush.bf16.msra.mxu0 0
        %1436 = vmatpush.bf16.msra.mxu0 0
        %1437 = vmatpush.bf16.msra.mxu0 %v1428
        %1438 = vmatmul.bf16.gmra.mxu0 %v1425
        %v1439 = vpop.f32.mrf.mxu0
        %v1440 = vadd.f32 0.0, %v1439
        %v1441 = vpop.f32.mrf.mxu0
        %1442 = vdwg.mxu0
        %1443 = vst.msk [vmem:[#allocation5] sm:$0xff] %vm316, %v1155
        %1445 = vrot.lane.b32.xlu0 %v1174, 8
        %v1446 = vpop.permute.xlu0 %1445
        %vm1448 = vcmask 130112
        %1449 = vst.msk [vmem:[#allocation5] sm:$0xff] %vm1448, %v1446
        %1451 = vrot.lane.b32.xlu0 %v1193, 16
        %v1452 = vpop.permute.xlu0 %1451
        %vm1454 = vcmask 195712
        %1455 = vst.msk [vmem:[#allocation5] sm:$0xff] %vm1454, %v1452
        %1457 = vrot.lane.b32.xlu0 %v1212, 24
        %v1458 = vpop.permute.xlu0 %1457
        %vm1460 = vcmask 261312
        %1461 = vst.msk [vmem:[#allocation5] sm:$0xff] %vm1460, %v1458
        %1463 = vrot.lane.b32.xlu0 %v1231, 32
        %v1464 = vpop.permute.xlu0 %1463
        %vm1466 = vcmask 326912
        %1467 = vst.msk [vmem:[#allocation5] sm:$0xff] %vm1466, %v1464
        %1469 = vrot.lane.b32.xlu0 %v1250, 40
        %v1470 = vpop.permute.xlu0 %1469
        %vm1472 = vcmask 392512
        %1473 = vst.msk [vmem:[#allocation5] sm:$0xff] %vm1472, %v1470
        %1475 = vrot.lane.b32.xlu0 %v1269, 48
        %v1476 = vpop.permute.xlu0 %1475
        %vm1478 = vcmask 458112
        %1479 = vst.msk [vmem:[#allocation5] sm:$0xff] %vm1478, %v1476
        %1481 = vrot.lane.b32.xlu0 %v1288, 56
        %v1482 = vpop.permute.xlu0 %1481
        %vm1484 = vcmask 523712
        %1485 = vst.msk [vmem:[#allocation5] sm:$0xff] %vm1484, %v1482
        %1486 = vst.msk [vmem:[#allocation5 + $0x8] sm:$0xff] %vm316, %v1307
        %1488 = vrot.lane.b32.xlu0 %v1326, 8
        %v1489 = vpop.permute.xlu0 %1488
        %1491 = vst.msk [vmem:[#allocation5 + $0x8] sm:$0xff] %vm1448, %v1489
        %1493 = vrot.lane.b32.xlu0 %v1345, 16
        %v1494 = vpop.permute.xlu0 %1493
        %1496 = vst.msk [vmem:[#allocation5 + $0x8] sm:$0xff] %vm1454, %v1494
        %1498 = vrot.lane.b32.xlu0 %v1364, 24
        %v1499 = vpop.permute.xlu0 %1498
        %1501 = vst.msk [vmem:[#allocation5 + $0x8] sm:$0xff] %vm1460, %v1499
        %1503 = vrot.lane.b32.xlu0 %v1383, 32
        %v1504 = vpop.permute.xlu0 %1503
        %1506 = vst.msk [vmem:[#allocation5 + $0x8] sm:$0xff] %vm1466, %v1504
        %1508 = vrot.lane.b32.xlu0 %v1402, 40
        %v1509 = vpop.permute.xlu0 %1508
        %1511 = vst.msk [vmem:[#allocation5 + $0x8] sm:$0xff] %vm1472, %v1509
        %1513 = vrot.lane.b32.xlu0 %v1421, 48
        %v1514 = vpop.permute.xlu0 %1513
        %1516 = vst.msk [vmem:[#allocation5 + $0x8] sm:$0xff] %vm1478, %v1514
        %1518 = vrot.lane.b32.xlu0 %v1440, 56
        %v1519 = vpop.permute.xlu0 %1518
        %1521 = vst.msk [vmem:[#allocation5 + $0x8] sm:$0xff] %vm1484, %v1519
        %v1522 = vld [vmem:[#allocation5] sm:$0xff]
        %v1523 = vld [vmem:[#allocation5 + $0x8] sm:$0xff]
        %v1524 = vpack.c.bf16 %v1523, %v1522
        %v1525 = vld [vmem:[%s3] sm:$0xf]
        %v1526 = vld [vmem:[%s3 + $0x4] sm:$0xf]
        %v1527 = vld [vmem:[%s3 + $0x8] sm:$0xf]
        %v1528 = vld [vmem:[%s3 + $0xc] sm:$0xf]
        %v1529 = vld [vmem:[%s3 + $0x10] sm:$0xf]
        %v1530 = vld [vmem:[%s3 + $0x14] sm:$0xf]
        %v1531 = vld [vmem:[%s3 + $0x18] sm:$0xf]
        %v1532 = vld [vmem:[%s3 + $0x1c] sm:$0xf]
        %v1533 = vld [vmem:[%s4] sm:$0x1]
        %v1535 = vperm.slane %v1533, 0
        %v1545 = vunpack.c.l.b16 %v1525
        %v1546 = vunpack.c.l.b16 %v1526
        %v1547 = vunpack.c.l.b16 %v1527
        %v1548 = vunpack.c.l.b16 %v1528
        %v1549 = vunpack.c.l.b16 %v1529
        %v1550 = vunpack.c.l.b16 %v1530
        %v1551 = vunpack.c.l.b16 %v1531
        %v1552 = vunpack.c.l.b16 %v1532
        %v1553 = vpack.c.b16 %v1546, %v1545
        %v1554 = vpack.c.b16 %v1548, %v1547
        %v1555 = vpack.c.b16 %v1550, %v1549
        %v1556 = vpack.c.b16 %v1552, %v1551
        %v1562 = vsel %vm284, %v1524, 0
        %1564 = vmatpush.bf16.msra.mxu0 0
        %1565 = vmatpush.bf16.msra.mxu0 0
        %1566 = vmatpush.bf16.msra.mxu0 0
        %1567 = vmatpush.bf16.msra.mxu0 0
        %1568 = vmatpush.bf16.msra.mxu0 %v1556
        %1569 = vmatpush.bf16.msra.mxu0 %v1555
        %1570 = vmatpush.bf16.msra.mxu0 %v1554
        %1571 = vmatpush.bf16.msra.mxu0 %v1553
        %1572 = vmatmul.bf16.gmra.mxu0 %v1562
        %v1573 = vpop.f32.mrf.mxu0
        %v1574 = vadd.f32 %v1535, %v1573
        %v1575 = vpop.f32.mrf.mxu0
        %v1576 = vadd.f32 %v1535, %v1575
        %1577 = vdwg.mxu0
        %1578 = vst.msk [vmem:[%s218] sm:$0xff] %vm284, %v1574
        %1579 = vst.msk [vmem:[%s218 + $0x8] sm:$0xff] %vm284, %v1576
        %s1580 = sand.u32 %s137, 1
        %s1581 = scalar_lea.sflag [#allocation7], %s1580
        %s1582 = sand.u32 %s137, 1
        %s1583 = smul.addr %s1582, 16
        %s1584 = scalar_lea.vmem [#allocation6], %s1583
        // Predicated region
        $region41: #{multi_head_self_attention.1} parent=39 // pred_check
          %p1585 = pneg %p147
        $region42: #{multi_head_self_attention.1} parent=39 // pred_check_branch
          %1587 = sbr.rel (%p1585) target = $region44
        $region43: #{multi_head_self_attention.1} parent=39 // pred_region
          %s1588 = smul.u32 2, %s19
          %1590 = vsyncadd %s1581, 0
          %s1591 = smul.addr %s1588, 8
          %s1592 = scalar_lea.hbm %s5, %s1591
          %s1593 = sshll.u32 %s1584, 4
          %s1594 = int_to_ptr.vmem [resolvable:$true] %s1593
          %s1595 = sshll.u32 %s1592, 4
          %s1596 = int_to_ptr.hbm [resolvable:$true] %s1595
          %1601 = dma.vmem_to_hbm [thread:$0]  %s1594, 256, %s1596, %s1581, 128, 128, 8
        $region44: #{multi_head_self_attention.1} parent=39 // pred_fallthru
          _
      $region40: #{multi_head_self_attention.1} parent=5 // pred_fallthru
        _
      %p1602 = scmp.le.s32.totalorder 2, %s14
      // Predicated region
      $region45: #{multi_head_self_attention.1} parent=5 // pred_check
        %p1603 = pneg %p1602
      $region46: #{multi_head_self_attention.1} parent=5 // pred_check_branch
        %1605 = sbr.rel (%p1603) target = $region48
      $region47: #{multi_head_self_attention.1} parent=5 // pred_region
        %s1606 = ssub.s32 %s14, 2
        // Predicated region
        $region49: #{multi_head_self_attention.1} parent=47 // pred_check
          %p1607 = pneg %p153
        $region50: #{multi_head_self_attention.1} parent=47 // pred_check_branch
          %1609 = sbr.rel (%p1607) target = $region52
        $region51: #{multi_head_self_attention.1} parent=47 // pred_region
          %s1610 = sand.u32 %s138, 1
          %s1611 = scalar_lea.sflag [#allocation7], %s1610
          %s1612 = sand.u32 %s138, 1
          %s1613 = smul.addr %s1612, 16
          %s1614 = scalar_lea.vmem [#allocation6], %s1613
          %1616 = dma.done %s1611, 256
        $region52: #{multi_head_self_attention.1} parent=47 // pred_fallthru
          _
      $region48: #{multi_head_self_attention.1} parent=5 // pred_fallthru
        _
    $region6: #{multi_head_self_attention.1} parent=1 // loop_footer
      %s18 = sadd.s32 1, %s14
    $region7: #{multi_head_self_attention.1} parent=1 // loop_footer_branch
      %13 = sbr.rel target = $region3
    $region8: #{multi_head_self_attention.1} parent=1 // loop_exit
      _
    %1617 = vsyncpa [#allocation7], 1
    %s1618 = scalar_lea.sflag [#allocation7], 1
    %1619 = vsyncpa %s1618, 1

</llo_original>
